<compile_context>
chip_gen: v6e
topology: v6e:2x2x1
jax: 0.10.0
libtpu: 0.0.40
codegen_flags: <defaults>
</compile_context>

<pallas_src>
import jax
import jax.numpy as jnp
from jax.experimental import pallas as pl
from jax.experimental.pallas import tpu as pltpu


def _round_up(a, m):
    return ((a + m - 1) // m) * m


def _cdiv(a, b):
    return (a + b - 1) // b


# ----------------------------------------------------------------------------
# Pallas kernel: fused 3-layer MLP with optional K-split on the first matmul.
#   grid = (row_blocks, k_blocks)   -- k (reduction) axis last, "arbitrary"
# ----------------------------------------------------------------------------
def _mlp_kernel(x_ref, w1_ref, b1_ref, w2_ref, b2_ref, w3_ref, b3_ref,
                o_ref, acc_ref):
    # x:  (bm, tk) bf16      w1: (tk, dim) bf16    b1: (1, dim) f32
    # w2: (dim, dim) bf16    b2: (1, dim) f32
    # w3: (dim, out) bf16    b3: (1, out) f32
    # o:  (bm, out) f32      acc: (bm, dim) f32 scratch
    k = pl.program_id(1)

    @pl.when(k == 0)
    def _init():
        acc_ref[...] = jnp.zeros_like(acc_ref)

    # Layer 1 partial product: bf16 operands on the MXU, f32 accumulation.
    acc_ref[...] += jnp.dot(x_ref[...], w1_ref[...],
                            preferred_element_type=jnp.float32)

    @pl.when(k == pl.num_programs(1) - 1)
    def _finalize():
        # Bias-add / ReLU in f32 (VPU); downcast to bf16 only to feed the MXU.
        h = jnp.maximum(acc_ref[...] + b1_ref[...], 0.0)
        h = jnp.dot(h.astype(jnp.bfloat16), w2_ref[...],
                    preferred_element_type=jnp.float32) + b2_ref[...]
        h = jnp.maximum(h, 0.0)
        o = jnp.dot(h.astype(jnp.bfloat16), w3_ref[...],
                    preferred_element_type=jnp.float32) + b3_ref[...]
        o_ref[...] = o.astype(o_ref.dtype)


# ----------------------------------------------------------------------------
# Wrapper
# ----------------------------------------------------------------------------
def mlp_forward(params, x, *, block_rows=256, max_k_block=2048):
    """Equivalent of MLP.forward: model(x.view(x.size(0), -1))."""
    B = x.shape[0]
    x2 = x.reshape(B, -1)                       # x.view(B, -1)
    in_dim = x2.shape[1]
    dim = params["w1"].shape[1]
    out_dim = params["w3"].shape[1]

    # bf16 MXU feeds (weights + activations); biases stay f32.
    x2 = x2.astype(jnp.bfloat16)
    w1 = params["w1"].astype(jnp.bfloat16)
    w2 = params["w2"].astype(jnp.bfloat16)
    w3 = params["w3"].astype(jnp.bfloat16)
    b1 = params["b1"].reshape(1, -1).astype(jnp.float32)
    b2 = params["b2"].reshape(1, -1).astype(jnp.float32)
    b3 = params["b3"].reshape(1, -1).astype(jnp.float32)

    # ---- batch-row tiling: minimal padding, >=2 grid steps when possible ----
    rows8 = _round_up(B, 8)
    n_row = max(1, _cdiv(rows8, block_rows))
    if n_row == 1 and rows8 >= 16:
        n_row = 2                               # give both v7x TCs work
    bm = _round_up(_cdiv(rows8, n_row), 8)
    Bp = n_row * bm
    if Bp != B:
        x2 = jnp.pad(x2, ((0, Bp - B), (0, 0)))

    # ---- K tiling for the first matmul (only when in_dim is large) ----------
    if in_dim <= max_k_block:
        n_k, tk = 1, in_dim
    else:
        tk = _round_up(min(max_k_block, in_dim), 128)
        in_dim_p = _round_up(in_dim, tk)
        n_k = in_dim_p // tk
        if in_dim_p != in_dim:                  # zero-pad K (contributes 0)
            x2 = jnp.pad(x2, ((0, 0), (0, in_dim_p - in_dim)))
            w1 = jnp.pad(w1, ((0, in_dim_p - in_dim), (0, 0)))

    # ---- explicit VMEM budget (fits v7x 64 MiB; generous elsewhere) ---------
    vmem_est = (
        (tk * dim) * 2 * (1 if n_k == 1 else 2)          # w1 tile(s), bf16
        + (dim * dim + dim * out_dim) * 2                 # w2, w3 (bf16)
        + (2 * dim + out_dim) * 4                         # biases (f32)
        + bm * tk * 2 * 2                                 # x tile, double-buf
        + bm * out_dim * 4 * 2                            # out tile, double-buf
        + bm * dim * 4 * 3                                # acc scratch + temps
    )
    vmem_limit = int(min(64 * 1024 * 1024, max(2 * vmem_est, 32 * 1024 * 1024)))

    def run(single_buffer):
        def mode(is_resident):
            if single_buffer and is_resident:
                return {"pipeline_mode": pl.Buffered(1)}
            return {}

        grid_spec = pltpu.PrefetchScalarGridSpec(
            num_scalar_prefetch=0,
            grid=(n_row, n_k),
            in_specs=[
                pl.BlockSpec((bm, tk), lambda i, k: (i, k)),                    # x
                pl.BlockSpec((tk, dim), lambda i, k: (k, 0), **mode(n_k == 1)), # w1
                pl.BlockSpec((1, dim), lambda i, k: (0, 0), **mode(True)),      # b1
                pl.BlockSpec((dim, dim), lambda i, k: (0, 0), **mode(True)),    # w2
                pl.BlockSpec((1, dim), lambda i, k: (0, 0), **mode(True)),      # b2
                pl.BlockSpec((dim, out_dim), lambda i, k: (0, 0), **mode(True)),# w3
                pl.BlockSpec((1, out_dim), lambda i, k: (0, 0), **mode(True)),  # b3
            ],
            out_specs=pl.BlockSpec((bm, out_dim), lambda i, k: (i, 0)),
            scratch_shapes=[pltpu.VMEM((bm, dim), jnp.float32)],
        )
        return pl.pallas_call(
            _mlp_kernel,
            grid_spec=grid_spec,
            out_shape=jax.ShapeDtypeStruct((Bp, out_dim), jnp.float32),
            compiler_params=pltpu.CompilerParams(
                dimension_semantics=("parallel", "arbitrary"),
                vmem_limit_bytes=vmem_limit,
            ),
        )(x2, w1, b1, w2, b2, w3, b3)

    try:
        out = run(single_buffer=True)
    except Exception:
        # Fallback if this JAX build rejects Buffered(1) for resident weights.
        out = run(single_buffer=False)
    return out[:B]


# ----------------------------------------------------------------------------
# Pure-JAX reference (correctness check)
# ----------------------------------------------------------------------------
def mlp_reference(params, x):
    B = x.shape[0]
    h = x.reshape(B, -1).astype(jnp.float32)
    h = jnp.maximum(h @ params["w1"] + params["b1"], 0.0)
    h = jnp.maximum(h @ params["w2"] + params["b2"], 0.0)
    return h @ params["w3"] + params["b3"]


# ----------------------------------------------------------------------------
# Parameter construction (deterministic, PyTorch-style uniform init)
# ----------------------------------------------------------------------------
def build_params(key, input_dim, output_dim, dim=256):
    ks = jax.random.split(key, 6)

    def lin(kw, kb, fan_in, fan_out):
        bound = 1.0 / jnp.sqrt(float(fan_in))
        w = jax.random.uniform(kw, (fan_in, fan_out), jnp.float32, -bound, bound)
        b = jax.random.uniform(kb, (fan_out,), jnp.float32, -bound, bound)
        return w, b

    w1, b1 = lin(ks[0], ks[1], input_dim, dim)
    w2, b2 = lin(ks[2], ks[3], dim, dim)
    w3, b3 = lin(ks[4], ks[5], dim, output_dim)
    return {"w1": w1, "b1": b1, "w2": w2, "b2": b2, "w3": w3, "b3": b3}


# ----------------------------------------------------------------------------
if __name__ == "__main__":
    key = jax.random.PRNGKey(0)
    kp, kx = jax.random.split(key)

    # Primary MUNIT-style config: MLP(input_dim=style_dim, output_dim=num_adain,
    # dim=256, n_blk=3); style code arrives as (B, style_dim, 1, 1).
    B, style_dim, mlp_dim, out_dim = 8, 8, 256, 256
    params = build_params(kp, input_dim=style_dim, output_dim=out_dim, dim=mlp_dim)
    x = jax.random.normal(kx, (B, style_dim, 1, 1), jnp.float32)

    y = mlp_forward(params, x)
    jax.block_until_ready(y)
    y_ref = mlp_reference(params, x)
    assert y.shape == (B, out_dim), y.shape
    assert bool(jnp.all(jnp.isfinite(y)))
    assert bool(jnp.allclose(y, y_ref, rtol=2e-2, atol=2e-2)), (
        float(jnp.max(jnp.abs(y - y_ref))))

    # Secondary small check: exercises the K-split accumulation path, zero
    # K-padding, row padding and the 2-step row grid (v7x megacore split).
    B2, in2, dim2, out2 = 24, 400, 128, 128
    params2 = build_params(jax.random.PRNGKey(1), input_dim=in2,
                           output_dim=out2, dim=dim2)
    x2 = jax.random.normal(jax.random.PRNGKey(2), (B2, in2), jnp.float32)
    y2 = mlp_forward(params2, x2, max_k_block=128)
    jax.block_until_ready(y2)
    y2_ref = mlp_reference(params2, x2)
    assert y2.shape == (B2, out2), y2.shape
    assert bool(jnp.allclose(y2, y2_ref, rtol=2e-2, atol=2e-2)), (
        float(jnp.max(jnp.abs(y2 - y2_ref))))

    print("KERNEL_OK")
</pallas_src>

<mosaic_0001>
module attributes {stable_mosaic.version = 11 : i64} {
  func.func @_mlp_kernel(%arg0: i32, %arg1: i32, %arg2: memref<8x8xbf16, #tpu.memory_space<vmem>>, %arg3: memref<8x256xbf16, #tpu.memory_space<vmem>>, %arg4: memref<1x256xf32, #tpu.memory_space<vmem>>, %arg5: memref<256x256xbf16, #tpu.memory_space<vmem>>, %arg6: memref<1x256xf32, #tpu.memory_space<vmem>>, %arg7: memref<256x256xbf16, #tpu.memory_space<vmem>>, %arg8: memref<1x256xf32, #tpu.memory_space<vmem>>, %arg9: memref<8x256xf32, #tpu.memory_space<vmem>>, %arg10: memref<8x256xf32, #tpu.memory_space<vmem>>) attributes {dimension_semantics = [#tpu.dimension_semantics<parallel>, #tpu.dimension_semantics<arbitrary>], iteration_bounds = array<i64: 1, 1>, scalar_prefetch = 0 : i64, scratch_operands = 1 : i64, tpu.core_type = #tpu.core_type<tc>, window_params = [{transform_indices = @transform_0, window_bounds = array<i64: 8, 8>}, {pipeline_mode = #tpu.pipeline_mode<synchronous>, transform_indices = @transform_1, window_bounds = array<i64: 8, 256>}, {pipeline_mode = #tpu.pipeline_mode<synchronous>, transform_indices = @transform_2, window_bounds = array<i64: 1, 256>}, {pipeline_mode = #tpu.pipeline_mode<synchronous>, transform_indices = @transform_3, window_bounds = array<i64: 256, 256>}, {pipeline_mode = #tpu.pipeline_mode<synchronous>, transform_indices = @transform_4, window_bounds = array<i64: 1, 256>}, {pipeline_mode = #tpu.pipeline_mode<synchronous>, transform_indices = @transform_5, window_bounds = array<i64: 256, 256>}, {pipeline_mode = #tpu.pipeline_mode<synchronous>, transform_indices = @transform_6, window_bounds = array<i64: 1, 256>}, {transform_indices = @transform_7, window_bounds = array<i64: 8, 256>}]} {
    %c0_i32 = arith.constant 0 : i32
    %0 = arith.cmpi eq, %arg1, %c0_i32 : i32
    %1 = arith.extui %0 : i1 to i32
    %c0_i32_0 = arith.constant 0 : i32
    %2 = arith.cmpi ne, %1, %c0_i32_0 : i32
    scf.if %2 {
      %cst_10 = arith.constant 0.000000e+00 : f32
      %12 = vector.broadcast %cst_10 : f32 to vector<8x256xf32>
      %c0_11 = arith.constant 0 : index
      %c0_12 = arith.constant 0 : index
      %13 = vector.load %arg10[%c0_11, %c0_12] : memref<8x256xf32, #tpu.memory_space<vmem>>, vector<8x256xf32>
      tpu.vector_store %arg10[%c0_11, %c0_12], %12 {strides = array<i32>} : memref<8x256xf32, #tpu.memory_space<vmem>>, vector<8x256xf32>,
    } else {
    }
    %c0 = arith.constant 0 : index
    %c0_1 = arith.constant 0 : index
    %3 = vector.load %arg10[%c0, %c0_1] : memref<8x256xf32, #tpu.memory_space<vmem>>, vector<8x256xf32>
    %c0_2 = arith.constant 0 : index
    %c0_3 = arith.constant 0 : index
    %4 = vector.load %arg2[%c0_2, %c0_3] : memref<8x8xbf16, #tpu.memory_space<vmem>>, vector<8x8xbf16>
    %c0_4 = arith.constant 0 : index
    %c0_5 = arith.constant 0 : index
    %5 = vector.load %arg3[%c0_4, %c0_5] : memref<8x256xbf16, #tpu.memory_space<vmem>>, vector<8x256xbf16>
    %cst = arith.constant dense<0.000000e+00> : vector<8x256xf32>
    %6 = tpu.matmul %4, %5, %cst {dimension_numbers = #tpu.dot_dimension_numbers<[1], [0], [0], [1], [0, 0, 1, 1], [], []>} : vector<8x8xbf16>, vector<8x256xbf16>, vector<8x256xf32> -> vector<8x256xf32>
    %7 = arith.addf %3, %6 : vector<8x256xf32>
    %c0_6 = arith.constant 0 : index
    %c0_7 = arith.constant 0 : index
    %8 = vector.load %arg10[%c0_6, %c0_7] : memref<8x256xf32, #tpu.memory_space<vmem>>, vector<8x256xf32>
    tpu.vector_store %arg10[%c0_6, %c0_7], %7 {strides = array<i32>} : memref<8x256xf32, #tpu.memory_space<vmem>>, vector<8x256xf32>,
    %c0_i32_8 = arith.constant 0 : i32
    %9 = arith.cmpi eq, %arg1, %c0_i32_8 : i32
    %10 = arith.extui %9 : i1 to i32
    %c0_i32_9 = arith.constant 0 : i32
    %11 = arith.cmpi ne, %10, %c0_i32_9 : i32
    scf.if %11 {
      %c0_10 = arith.constant 0 : index
      %c0_11 = arith.constant 0 : index
      %12 = vector.load %arg10[%c0_10, %c0_11] : memref<8x256xf32, #tpu.memory_space<vmem>>, vector<8x256xf32>
      %c0_12 = arith.constant 0 : index
      %c0_13 = arith.constant 0 : index
      %13 = vector.load %arg4[%c0_12, %c0_13] : memref<1x256xf32, #tpu.memory_space<vmem>>, vector<1x256xf32>
      %14 = vector.broadcast %13 : vector<1x256xf32> to vector<8x256xf32>
      %15 = arith.addf %12, %14 : vector<8x256xf32>
      %cst_14 = arith.constant 0.000000e+00 : f32
      %16 = vector.broadcast %cst_14 : f32 to vector<8x256xf32>
      %17 = arith.maximumf %15, %16 : vector<8x256xf32>
      %18 = arith.truncf %17 : vector<8x256xf32> to vector<8x256xbf16>
      %c0_15 = arith.constant 0 : index
      %c0_16 = arith.constant 0 : index
      %19 = vector.load %arg5[%c0_15, %c0_16] : memref<256x256xbf16, #tpu.memory_space<vmem>>, vector<256x256xbf16>
      %cst_17 = arith.constant dense<0.000000e+00> : vector<8x256xf32>
      %20 = tpu.matmul %18, %19, %cst_17 {dimension_numbers = #tpu.dot_dimension_numbers<[1], [0], [0], [1], [0, 0, 1, 1], [], []>} : vector<8x256xbf16>, vector<256x256xbf16>, vector<8x256xf32> -> vector<8x256xf32>
      %c0_18 = arith.constant 0 : index
      %c0_19 = arith.constant 0 : index
      %21 = vector.load %arg6[%c0_18, %c0_19] : memref<1x256xf32, #tpu.memory_space<vmem>>, vector<1x256xf32>
      %22 = vector.broadcast %21 : vector<1x256xf32> to vector<8x256xf32>
      %23 = arith.addf %20, %22 : vector<8x256xf32>
      %cst_20 = arith.constant 0.000000e+00 : f32
      %24 = vector.broadcast %cst_20 : f32 to vector<8x256xf32>
      %25 = arith.maximumf %23, %24 : vector<8x256xf32>
      %26 = arith.truncf %25 : vector<8x256xf32> to vector<8x256xbf16>
      %c0_21 = arith.constant 0 : index
      %c0_22 = arith.constant 0 : index
      %27 = vector.load %arg7[%c0_21, %c0_22] : memref<256x256xbf16, #tpu.memory_space<vmem>>, vector<256x256xbf16>
      %cst_23 = arith.constant dense<0.000000e+00> : vector<8x256xf32>
      %28 = tpu.matmul %26, %27, %cst_23 {dimension_numbers = #tpu.dot_dimension_numbers<[1], [0], [0], [1], [0, 0, 1, 1], [], []>} : vector<8x256xbf16>, vector<256x256xbf16>, vector<8x256xf32> -> vector<8x256xf32>
      %c0_24 = arith.constant 0 : index
      %c0_25 = arith.constant 0 : index
      %29 = vector.load %arg8[%c0_24, %c0_25] : memref<1x256xf32, #tpu.memory_space<vmem>>, vector<1x256xf32>
      %30 = vector.broadcast %29 : vector<1x256xf32> to vector<8x256xf32>
      %31 = arith.addf %28, %30 : vector<8x256xf32>
      %c0_26 = arith.constant 0 : index
      %c0_27 = arith.constant 0 : index
      %32 = vector.load %arg9[%c0_26, %c0_27] : memref<8x256xf32, #tpu.memory_space<vmem>>, vector<8x256xf32>
      tpu.vector_store %arg9[%c0_26, %c0_27], %31 {strides = array<i32>} : memref<8x256xf32, #tpu.memory_space<vmem>>, vector<8x256xf32>,
    } else {
    }
    return
  }
  func.func @transform_0(%arg0: i32, %arg1: i32) -> (i32, i32) {
    %c0_i32 = arith.constant 0 : i32
    return %arg0, %arg1 : i32, i32
  }
  func.func @transform_1(%arg0: i32, %arg1: i32) -> (i32, i32) {
    %c0_i32 = arith.constant 0 : i32
    %c0_i32_0 = arith.constant 0 : i32
    return %arg1, %c0_i32 : i32, i32
  }
  func.func @transform_2(%arg0: i32, %arg1: i32) -> (i32, i32) {
    %c0_i32 = arith.constant 0 : i32
    %c0_i32_0 = arith.constant 0 : i32
    %c0_i32_1 = arith.constant 0 : i32
    return %c0_i32, %c0_i32_0 : i32, i32
  }
  func.func @transform_3(%arg0: i32, %arg1: i32) -> (i32, i32) {
    %c0_i32 = arith.constant 0 : i32
    %c0_i32_0 = arith.constant 0 : i32
    %c0_i32_1 = arith.constant 0 : i32
    return %c0_i32, %c0_i32_0 : i32, i32
  }
  func.func @transform_4(%arg0: i32, %arg1: i32) -> (i32, i32) {
    %c0_i32 = arith.constant 0 : i32
    %c0_i32_0 = arith.constant 0 : i32
    %c0_i32_1 = arith.constant 0 : i32
    return %c0_i32, %c0_i32_0 : i32, i32
  }
  func.func @transform_5(%arg0: i32, %arg1: i32) -> (i32, i32) {
    %c0_i32 = arith.constant 0 : i32
    %c0_i32_0 = arith.constant 0 : i32
    %c0_i32_1 = arith.constant 0 : i32
    return %c0_i32, %c0_i32_0 : i32, i32
  }
  func.func @transform_6(%arg0: i32, %arg1: i32) -> (i32, i32) {
    %c0_i32 = arith.constant 0 : i32
    %c0_i32_0 = arith.constant 0 : i32
    %c0_i32_1 = arith.constant 0 : i32
    return %c0_i32, %c0_i32_0 : i32, i32
  }
  func.func @transform_7(%arg0: i32, %arg1: i32) -> (i32, i32) {
    %c0_i32 = arith.constant 0 : i32
    %c0_i32_0 = arith.constant 0 : i32
    return %arg0, %c0_i32 : i32, i32
  }
}

module attributes {stable_mosaic.version = 11 : i64} {
  func.func @_mlp_kernel(%arg0: i32, %arg1: i32, %arg2: memref<8x8xbf16, #tpu.memory_space<vmem>>, %arg3: memref<8x256xbf16, #tpu.memory_space<vmem>>, %arg4: memref<1x256xf32, #tpu.memory_space<vmem>>, %arg5: memref<256x256xbf16, #tpu.memory_space<vmem>>, %arg6: memref<1x256xf32, #tpu.memory_space<vmem>>, %arg7: memref<256x256xbf16, #tpu.memory_space<vmem>>, %arg8: memref<1x256xf32, #tpu.memory_space<vmem>>, %arg9: memref<8x256xf32, #tpu.memory_space<vmem>>, %arg10: memref<8x256xf32, #tpu.memory_space<vmem>>) attributes {dimension_semantics = [#tpu.dimension_semantics<parallel>, #tpu.dimension_semantics<arbitrary>], iteration_bounds = array<i64: 1, 1>, scalar_prefetch = 0 : i64, scratch_operands = 1 : i64, tpu.core_type = #tpu.core_type<tc>, window_params = [{transform_indices = @transform_0, window_bounds = array<i64: 8, 8>}, {transform_indices = @transform_1, window_bounds = array<i64: 8, 256>}, {pipeline_mode = #tpu.pipeline_mode<synchronous>, transform_indices = @transform_2, window_bounds = array<i64: 1, 256>}, {pipeline_mode = #tpu.pipeline_mode<synchronous>, transform_indices = @transform_3, window_bounds = array<i64: 256, 256>}, {pipeline_mode = #tpu.pipeline_mode<synchronous>, transform_indices = @transform_4, window_bounds = array<i64: 1, 256>}, {pipeline_mode = #tpu.pipeline_mode<synchronous>, transform_indices = @transform_5, window_bounds = array<i64: 256, 256>}, {pipeline_mode = #tpu.pipeline_mode<synchronous>, transform_indices = @transform_6, window_bounds = array<i64: 1, 256>}, {transform_indices = @transform_7, window_bounds = array<i64: 8, 256>}]} {
    %c0_i32 = arith.constant 0 : i32
    %0 = arith.cmpi eq, %arg1, %c0_i32 : i32
    %1 = arith.extui %0 : i1 to i32
    %c0_i32_0 = arith.constant 0 : i32
    %2 = arith.cmpi ne, %1, %c0_i32_0 : i32
    scf.if %2 {
      %cst_10 = arith.constant 0.000000e+00 : f32
      %12 = vector.broadcast %cst_10 : f32 to vector<8x256xf32>
      %c0_11 = arith.constant 0 : index
      %c0_12 = arith.constant 0 : index
      %13 = vector.load %arg10[%c0_11, %c0_12] : memref<8x256xf32, #tpu.memory_space<vmem>>, vector<8x256xf32>
      tpu.vector_store %arg10[%c0_11, %c0_12], %12 {strides = array<i32>} : memref<8x256xf32, #tpu.memory_space<vmem>>, vector<8x256xf32>,
    } else {
    }
    %c0 = arith.constant 0 : index
    %c0_1 = arith.constant 0 : index
    %3 = vector.load %arg10[%c0, %c0_1] : memref<8x256xf32, #tpu.memory_space<vmem>>, vector<8x256xf32>
    %c0_2 = arith.constant 0 : index
    %c0_3 = arith.constant 0 : index
    %4 = vector.load %arg2[%c0_2, %c0_3] : memref<8x8xbf16, #tpu.memory_space<vmem>>, vector<8x8xbf16>
    %c0_4 = arith.constant 0 : index
    %c0_5 = arith.constant 0 : index
    %5 = vector.load %arg3[%c0_4, %c0_5] : memref<8x256xbf16, #tpu.memory_space<vmem>>, vector<8x256xbf16>
    %cst = arith.constant dense<0.000000e+00> : vector<8x256xf32>
    %6 = tpu.matmul %4, %5, %cst {dimension_numbers = #tpu.dot_dimension_numbers<[1], [0], [0], [1], [0, 0, 1, 1], [], []>} : vector<8x8xbf16>, vector<8x256xbf16>, vector<8x256xf32> -> vector<8x256xf32>
    %7 = arith.addf %3, %6 : vector<8x256xf32>
    %c0_6 = arith.constant 0 : index
    %c0_7 = arith.constant 0 : index
    %8 = vector.load %arg10[%c0_6, %c0_7] : memref<8x256xf32, #tpu.memory_space<vmem>>, vector<8x256xf32>
    tpu.vector_store %arg10[%c0_6, %c0_7], %7 {strides = array<i32>} : memref<8x256xf32, #tpu.memory_space<vmem>>, vector<8x256xf32>,
    %c0_i32_8 = arith.constant 0 : i32
    %9 = arith.cmpi eq, %arg1, %c0_i32_8 : i32
    %10 = arith.extui %9 : i1 to i32
    %c0_i32_9 = arith.constant 0 : i32
    %11 = arith.cmpi ne, %10, %c0_i32_9 : i32
    scf.if %11 {
      %c0_10 = arith.constant 0 : index
      %c0_11 = arith.constant 0 : index
      %12 = vector.load %arg10[%c0_10, %c0_11] : memref<8x256xf32, #tpu.memory_space<vmem>>, vector<8x256xf32>
      %c0_12 = arith.constant 0 : index
      %c0_13 = arith.constant 0 : index
      %13 = vector.load %arg4[%c0_12, %c0_13] : memref<1x256xf32, #tpu.memory_space<vmem>>, vector<1x256xf32>
      %14 = vector.broadcast %13 : vector<1x256xf32> to vector<8x256xf32>
      %15 = arith.addf %12, %14 : vector<8x256xf32>
      %cst_14 = arith.constant 0.000000e+00 : f32
      %16 = vector.broadcast %cst_14 : f32 to vector<8x256xf32>
      %17 = arith.maximumf %15, %16 : vector<8x256xf32>
      %18 = arith.truncf %17 : vector<8x256xf32> to vector<8x256xbf16>
      %c0_15 = arith.constant 0 : index
      %c0_16 = arith.constant 0 : index
      %19 = vector.load %arg5[%c0_15, %c0_16] : memref<256x256xbf16, #tpu.memory_space<vmem>>, vector<256x256xbf16>
      %cst_17 = arith.constant dense<0.000000e+00> : vector<8x256xf32>
      %20 = tpu.matmul %18, %19, %cst_17 {dimension_numbers = #tpu.dot_dimension_numbers<[1], [0], [0], [1], [0, 0, 1, 1], [], []>} : vector<8x256xbf16>, vector<256x256xbf16>, vector<8x256xf32> -> vector<8x256xf32>
      %c0_18 = arith.constant 0 : index
      %c0_19 = arith.constant 0 : index
      %21 = vector.load %arg6[%c0_18, %c0_19] : memref<1x256xf32, #tpu.memory_space<vmem>>, vector<1x256xf32>
      %22 = vector.broadcast %21 : vector<1x256xf32> to vector<8x256xf32>
      %23 = arith.addf %20, %22 : vector<8x256xf32>
      %cst_20 = arith.constant 0.000000e+00 : f32
      %24 = vector.broadcast %cst_20 : f32 to vector<8x256xf32>
      %25 = arith.maximumf %23, %24 : vector<8x256xf32>
      %26 = arith.truncf %25 : vector<8x256xf32> to vector<8x256xbf16>
      %c0_21 = arith.constant 0 : index
      %c0_22 = arith.constant 0 : index
      %27 = vector.load %arg7[%c0_21, %c0_22] : memref<256x256xbf16, #tpu.memory_space<vmem>>, vector<256x256xbf16>
      %cst_23 = arith.constant dense<0.000000e+00> : vector<8x256xf32>
      %28 = tpu.matmul %26, %27, %cst_23 {dimension_numbers = #tpu.dot_dimension_numbers<[1], [0], [0], [1], [0, 0, 1, 1], [], []>} : vector<8x256xbf16>, vector<256x256xbf16>, vector<8x256xf32> -> vector<8x256xf32>
      %c0_24 = arith.constant 0 : index
      %c0_25 = arith.constant 0 : index
      %29 = vector.load %arg8[%c0_24, %c0_25] : memref<1x256xf32, #tpu.memory_space<vmem>>, vector<1x256xf32>
      %30 = vector.broadcast %29 : vector<1x256xf32> to vector<8x256xf32>
      %31 = arith.addf %28, %30 : vector<8x256xf32>
      %c0_26 = arith.constant 0 : index
      %c0_27 = arith.constant 0 : index
      %32 = vector.load %arg9[%c0_26, %c0_27] : memref<8x256xf32, #tpu.memory_space<vmem>>, vector<8x256xf32>
      tpu.vector_store %arg9[%c0_26, %c0_27], %31 {strides = array<i32>} : memref<8x256xf32, #tpu.memory_space<vmem>>, vector<8x256xf32>,
    } else {
    }
    return
  }
  func.func @transform_0(%arg0: i32, %arg1: i32) -> (i32, i32) {
    %c0_i32 = arith.constant 0 : i32
    return %arg0, %arg1 : i32, i32
  }
  func.func @transform_1(%arg0: i32, %arg1: i32) -> (i32, i32) {
    %c0_i32 = arith.constant 0 : i32
    %c0_i32_0 = arith.constant 0 : i32
    return %arg1, %c0_i32 : i32, i32
  }
  func.func @transform_2(%arg0: i32, %arg1: i32) -> (i32, i32) {
    %c0_i32 = arith.constant 0 : i32
    %c0_i32_0 = arith.constant 0 : i32
    %c0_i32_1 = arith.constant 0 : i32
    return %c0_i32, %c0_i32_0 : i32, i32
  }
  func.func @transform_3(%arg0: i32, %arg1: i32) -> (i32, i32) {
    %c0_i32 = arith.constant 0 : i32
    %c0_i32_0 = arith.constant 0 : i32
    %c0_i32_1 = arith.constant 0 : i32
    return %c0_i32, %c0_i32_0 : i32, i32
  }
  func.func @transform_4(%arg0: i32, %arg1: i32) -> (i32, i32) {
    %c0_i32 = arith.constant 0 : i32
    %c0_i32_0 = arith.constant 0 : i32
    %c0_i32_1 = arith.constant 0 : i32
    return %c0_i32, %c0_i32_0 : i32, i32
  }
  func.func @transform_5(%arg0: i32, %arg1: i32) -> (i32, i32) {
    %c0_i32 = arith.constant 0 : i32
    %c0_i32_0 = arith.constant 0 : i32
    %c0_i32_1 = arith.constant 0 : i32
    return %c0_i32, %c0_i32_0 : i32, i32
  }
  func.func @transform_6(%arg0: i32, %arg1: i32) -> (i32, i32) {
    %c0_i32 = arith.constant 0 : i32
    %c0_i32_0 = arith.constant 0 : i32
    %c0_i32_1 = arith.constant 0 : i32
    return %c0_i32, %c0_i32_0 : i32, i32
  }
  func.func @transform_7(%arg0: i32, %arg1: i32) -> (i32, i32) {
    %c0_i32 = arith.constant 0 : i32
    %c0_i32_0 = arith.constant 0 : i32
    return %arg0, %c0_i32 : i32, i32
  }
}

</mosaic_0001>

<llo_original>
// kernel: tpu_custom_call.1
$region0: #{tpu_custom_call.1}
  #allocation0 [shape = 'u32[]', space=smem, size = 0x4, offset = 0x4, fixed_abs, tag = 'smem constant byte address 0x4 - core index']
  #allocation1 [shape = 'u32[144,128]{1,0:T(1,128)}', space=vmem, size = 0x12000, scoped, tag = 'internal scratch']
  #allocation2 [shape = 'f32[8,256]{1,0:T(8,128)}', space=vmem, size = 0x2000, scoped, tag = 'scratch operand']
  %s0 = inlined_call_operand.hbm [shape: bf16[8,8], index: 0, kind: input, shape index: {}]
  %s1 = inlined_call_operand.hbm [shape: bf16[8,256], index: 1, kind: input, shape index: {}]
  %s2 = inlined_call_operand.vmem [shape: f32[1,256], index: 2, kind: input, shape index: {}]
  %s3 = inlined_call_operand.hbm [shape: bf16[256,256], index: 3, kind: input, shape index: {}]
  %s4 = inlined_call_operand.vmem [shape: f32[1,256], index: 4, kind: input, shape index: {}]
  %s5 = inlined_call_operand.hbm [shape: bf16[256,256], index: 5, kind: input, shape index: {}]
  %s6 = inlined_call_operand.vmem [shape: f32[1,256], index: 6, kind: input, shape index: {}]
  %s7 = inlined_call_operand.hbm [shape: f32[8,256], index: 7, kind: output, shape index: {}]
  %s8 = sld [smem:[#allocation0]]
  $region62: #{tpu_custom_call.1} parent=0
    _
  %s10 = ssub.s32 1, %s8
  %s11 = scalar_select 0, %s10, %s8
  $region1: #{tpu_custom_call.1} parent=0
    #allocation3 [shape = 'u8[2048]{0}', space=vmem, size = 0x800, scoped, tag = 'input window, operand 0, single buffered']
    #allocation4 [shape = 's32[1]{0}', space=sflag, size = 0x4, scoped, tag = 'scoped memory for tpu_custom_call.1']
    #allocation5 [shape = 's32[1]{0}', space=sflag, size = 0x4, scoped, tag = 'scoped memory for tpu_custom_call.1']
    #allocation6 [shape = 'u8[4096]{0}', space=vmem, size = 0x1000, scoped, tag = 'input window, operand 1, single buffered']
    #allocation7 [shape = 's32[1]{0}', space=sflag, size = 0x4, scoped, tag = 'scoped memory for tpu_custom_call.1']
    #allocation8 [shape = 'u8[131072]{0}', space=vmem, size = 0x20000, scoped, tag = 'input window, operand 3, single buffered']
    #allocation9 [shape = 'u8[131072]{0}', space=vmem, size = 0x20000, scoped, tag = 'input window, operand 5, single buffered']
    #allocation10 [shape = 's32[1]{0}', space=sflag, size = 0x4, scoped, tag = 'scoped memory for tpu_custom_call.1']
    #allocation11 [shape = 'u8[8192]{0}', space=vmem, size = 0x2000, scoped, tag = 'output window, operand 0, single buffered']
    %12 = vsyncpa [#allocation4], 0
    %13 = vsyncpa [#allocation7], 0
    %14 = vsyncpa [#allocation10], 0
    %15 = vsyncpa [#allocation5], 0
    // Predicated region
    $region2: #{tpu_custom_call.1} parent=1 // pred_check
      _
    $region3: #{tpu_custom_call.1} parent=1 // pred_check_branch
      %17 = sbr.rel (0) target = $region5
    $region4: #{tpu_custom_call.1} parent=1 // pred_region
      %s19 = ssub.s32 64, 64
      %20 = vsyncadd [#allocation4], %s19
      %s22 = sshll.u32 [#allocation3], 4
      %s23 = int_to_ptr.vmem [resolvable:$true] %s22
      %25 = dma.hbm_to_vmem [thread:$0]  %s0, 64, %s23, [#allocation4]
    $region5: #{tpu_custom_call.1} parent=1 // pred_fallthru
      _
    // Predicated region
    $region6: #{tpu_custom_call.1} parent=1 // pred_check
      _
    $region7: #{tpu_custom_call.1} parent=1 // pred_check_branch
      %27 = sbr.rel (0) target = $region9
    $region8: #{tpu_custom_call.1} parent=1 // pred_region
      %s29 = ssub.s32 128, 128
      %30 = vsyncadd [#allocation7], %s29
      %s32 = sshll.u32 [#allocation6], 4
      %s33 = int_to_ptr.vmem [resolvable:$true] %s32
      %35 = dma.hbm_to_vmem [thread:$0]  %s1, 128, %s33, [#allocation7]
    $region9: #{tpu_custom_call.1} parent=1 // pred_fallthru
      _
    // Predicated region
    $region10: #{tpu_custom_call.1} parent=1 // pred_check
      _
    $region11: #{tpu_custom_call.1} parent=1 // pred_check_branch
      %37 = sbr.rel (0) target = $region13
    $region12: #{tpu_custom_call.1} parent=1 // pred_region
      _
    $region13: #{tpu_custom_call.1} parent=1 // pred_fallthru
      _
    // Predicated region
    $region14: #{tpu_custom_call.1} parent=1 // pred_check
      _
    $region15: #{tpu_custom_call.1} parent=1 // pred_check_branch
      %39 = sbr.rel (0) target = $region17
    $region16: #{tpu_custom_call.1} parent=1 // pred_region
      %s41 = ssub.s32 4096, 4096
      %42 = vsyncadd [#allocation7], %s41
      %s43 = sshll.u32 [#allocation8], 4
      %s44 = int_to_ptr.vmem [resolvable:$true] %s43
      %49 = dma.hbm_to_vmem [thread:$0]  %s3, 4096, %s44, [#allocation7], 128, 128, 8
    $region17: #{tpu_custom_call.1} parent=1 // pred_fallthru
      _
    // Predicated region
    $region18: #{tpu_custom_call.1} parent=1 // pred_check
      _
    $region19: #{tpu_custom_call.1} parent=1 // pred_check_branch
      %51 = sbr.rel (0) target = $region21
    $region20: #{tpu_custom_call.1} parent=1 // pred_region
      _
    $region21: #{tpu_custom_call.1} parent=1 // pred_fallthru
      _
    // Predicated region
    $region22: #{tpu_custom_call.1} parent=1 // pred_check
      _
    $region23: #{tpu_custom_call.1} parent=1 // pred_check_branch
      %53 = sbr.rel (0) target = $region25
    $region24: #{tpu_custom_call.1} parent=1 // pred_region
      %s55 = ssub.s32 4096, 4096
      %56 = vsyncadd [#allocation10], %s55
      %s57 = sshll.u32 [#allocation9], 4
      %s58 = int_to_ptr.vmem [resolvable:$true] %s57
      %63 = dma.hbm_to_vmem [thread:$0]  %s5, 4096, %s58, [#allocation10], 128, 128, 8
    $region25: #{tpu_custom_call.1} parent=1 // pred_fallthru
      _
    // Predicated region
    $region26: #{tpu_custom_call.1} parent=1 // pred_check
      _
    $region27: #{tpu_custom_call.1} parent=1 // pred_check_branch
      %65 = sbr.rel (0) target = $region29
    $region28: #{tpu_custom_call.1} parent=1 // pred_region
      _
    $region29: #{tpu_custom_call.1} parent=1 // pred_fallthru
      _
    // Predicated region
    $region30: #{tpu_custom_call.1} parent=1 // pred_check
      _
    $region31: #{tpu_custom_call.1} parent=1 // pred_check_branch
      %67 = sbr.rel (0) target = $region33
    $region32: #{tpu_custom_call.1} parent=1 // pred_region
      %68 = dma.done [#allocation4], 64
    $region33: #{tpu_custom_call.1} parent=1 // pred_fallthru
      _
    // Predicated region
    $region34: #{tpu_custom_call.1} parent=1 // pred_check
      _
    $region35: #{tpu_custom_call.1} parent=1 // pred_check_branch
      %70 = sbr.rel (0) target = $region37
    $region36: #{tpu_custom_call.1} parent=1 // pred_region
      %71 = dma.done [#allocation7], 128
    $region37: #{tpu_custom_call.1} parent=1 // pred_fallthru
      _
    // Predicated region
    $region38: #{tpu_custom_call.1} parent=1 // pred_check
      _
    $region39: #{tpu_custom_call.1} parent=1 // pred_check_branch
      %73 = sbr.rel (0) target = $region41
    $region40: #{tpu_custom_call.1} parent=1 // pred_region
      %74 = dma.done [#allocation7], 4096
    $region41: #{tpu_custom_call.1} parent=1 // pred_fallthru
      _
    // Predicated region
    $region42: #{tpu_custom_call.1} parent=1 // pred_check
      _
    $region43: #{tpu_custom_call.1} parent=1 // pred_check_branch
      %76 = sbr.rel (0) target = $region45
    $region44: #{tpu_custom_call.1} parent=1 // pred_region
      %77 = dma.done [#allocation10], 4096
    $region45: #{tpu_custom_call.1} parent=1 // pred_fallthru
      _
    %p79 = scmp.eq.s32.totalorder 0, 0
    // Predicated region
    $region46: #{tpu_custom_call.1} parent=1 // pred_check
      %p80 = pneg %p79
    $region47: #{tpu_custom_call.1} parent=1 // pred_check_branch
      %82 = sbr.rel (%p80) target = $region49
    $region48: #{tpu_custom_call.1} parent=1 // pred_region
      %83 = vst [vmem:[#allocation2] sm:$0xff] 0.0
      %84 = vst [vmem:[#allocation2 + $0x8] sm:$0xff] 0.0
    $region49: #{tpu_custom_call.1} parent=1 // pred_fallthru
      _
    %v85 = vld [vmem:[#allocation2] sm:$0xff]
    %v86 = vld [vmem:[#allocation2 + $0x8] sm:$0xff]
    %v87 = vld [vmem:[#allocation3] sm:$0xf]
    %v88 = vld [vmem:[#allocation6] sm:$0xff]
    %v90 = vunpack.c.l.b16 %v88
    %v91 = vunpack.c.h.b16 %v88
    %v92 = vpack.c.b16 %v90, %v90
    %v93 = vpack.c.b16 %v91, %v91
    %vm94 = vcmask 64512
    %v96 = vsel %vm94, %v87, 0
    %vm98 = vcmask 1043456
    %v100 = vsel %vm98, %v92, 0
    %v103 = vsel %vm98, %v93, 0
    %105 = vmatprep.subr.bf16.mxu0 0
    %106 = vmatpush1.bf16.msra.mxu0 0
    %107 = vmatprep.subr.bf16.mxu0 0
    %108 = vmatpush1.bf16.msra.mxu0 0
    %109 = vmatprep.subr.bf16.mxu0 0
    %110 = vmatpush1.bf16.msra.mxu0 0
    %111 = vmatprep.subr.bf16.mxu0 0
    %112 = vmatpush1.bf16.msra.mxu0 0
    %113 = vmatprep.subr.bf16.mxu0 0
    %114 = vmatpush1.bf16.msra.mxu0 0
    %115 = vmatprep.subr.bf16.mxu0 0
    %116 = vmatpush1.bf16.msra.mxu0 0
    %117 = vmatprep.subr.bf16.mxu0 0
    %118 = vmatpush1.bf16.msra.mxu0 0
    %119 = vmatprep.subr.bf16.mxu0 %v103
    %120 = vmatpush1.bf16.msra.mxu0 %v100
    %121 = vmatprep.subr.bf16.mxu0 0
    %122 = vmatpush2.bf16.msra.mxu0 0
    %123 = vmatprep.subr.bf16.mxu0 0
    %124 = vmatpush2.bf16.msra.mxu0 0
    %125 = vmatprep.subr.bf16.mxu0 0
    %126 = vmatpush2.bf16.msra.mxu0 0
    %127 = vmatprep.subr.bf16.mxu0 0
    %128 = vmatpush2.bf16.msra.mxu0 0
    %129 = vmatprep.subr.bf16.mxu0 0
    %130 = vmatpush2.bf16.msra.mxu0 0
    %131 = vmatprep.subr.bf16.mxu0 0
    %132 = vmatpush2.bf16.msra.mxu0 0
    %133 = vmatprep.subr.bf16.mxu0 0
    %134 = vmatpush2.bf16.msra.mxu0 0
    %135 = vmatprep.subr.bf16.mxu0 0
    %136 = vmatpush2.bf16.msra.mxu0 0
    %137 = vmatprep.mubr.bf16.mxu0 0
    %138 = vmatmul.mubr.bf16.gmra.mxu0 %v96
    %v139 = vpop.f32.mrf.mxu0
    %v140 = vadd.f32 0.0, %v139
    %v141 = vpop.f32.mrf.mxu0
    %v142 = vadd.f32 0.0, %v141
    %v143 = vpop.f32.mrf.mxu0
    %v144 = vpop.f32.mrf.mxu0
    %145 = vdwg.mxu0
    %v146 = vadd.f32 %v85, %v140
    %v147 = vadd.f32 %v86, %v142
    %148 = vst [vmem:[#allocation2] sm:$0xff] %v146
    %149 = vst [vmem:[#allocation2 + $0x8] sm:$0xff] %v147
    // Predicated region
    $region50: #{tpu_custom_call.1} parent=1 // pred_check
      %p150 = pneg %p79
    $region51: #{tpu_custom_call.1} parent=1 // pred_check_branch
      %152 = sbr.rel (%p150) target = $region53
    $region52: #{tpu_custom_call.1} parent=1 // pred_region
      %v153 = vld [vmem:[#allocation2] sm:$0xff]
      %v154 = vld [vmem:[#allocation2 + $0x8] sm:$0xff]
      %v155 = vld [vmem:[%s2] sm:$0x3]
      %v157 = vlaneseq
      %v158 = vshrl.u32 %v157, 7
      %v159 = vsub.s32 0, %v158
      %v160 = vrot.slane %v155, %v159
      %v161 = vlaneseq
      %v162 = vshrl.u32 %v161, 7
      %v163 = vsub.s32 1, %v162
      %v164 = vrot.slane %v155, %v163
      %v167 = vadd.f32 %v153, %v160
      %v168 = vadd.f32 %v154, %v164
      %v169 = vmax.f32 %v167, 0.0
      %v170 = vmax.f32 %v168, 0.0
      %v171 = vpack.c.bf16 %v169, %v169
      %v172 = vpack.c.bf16 %v170, %v170
      %v173 = vld [vmem:[#allocation8] sm:$0xff]
      %v174 = vld [vmem:[#allocation8 + $0x8] sm:$0xff]
      %v175 = vld [vmem:[#allocation8 + $0x10] sm:$0xff]
      %v176 = vld [vmem:[#allocation8 + $0x18] sm:$0xff]
      %v177 = vld [vmem:[#allocation8 + $0x20] sm:$0xff]
      %v178 = vld [vmem:[#allocation8 + $0x28] sm:$0xff]
      %v179 = vld [vmem:[#allocation8 + $0x30] sm:$0xff]
      %v180 = vld [vmem:[#allocation8 + $0x38] sm:$0xff]
      %v181 = vld [vmem:[#allocation8 + $0x40] sm:$0xff]
      %v182 = vld [vmem:[#allocation8 + $0x48] sm:$0xff]
      %v183 = vld [vmem:[#allocation8 + $0x50] sm:$0xff]
      %v184 = vld [vmem:[#allocation8 + $0x58] sm:$0xff]
      %v185 = vld [vmem:[#allocation8 + $0x60] sm:$0xff]
      %v186 = vld [vmem:[#allocation8 + $0x68] sm:$0xff]
      %v187 = vld [vmem:[#allocation8 + $0x70] sm:$0xff]
      %v188 = vld [vmem:[#allocation8 + $0x78] sm:$0xff]
      %v189 = vld [vmem:[#allocation8 + $0x80] sm:$0xff]
      %v190 = vld [vmem:[#allocation8 + $0x88] sm:$0xff]
      %v191 = vld [vmem:[#allocation8 + $0x90] sm:$0xff]
      %v192 = vld [vmem:[#allocation8 + $0x98] sm:$0xff]
      %v193 = vld [vmem:[#allocation8 + $0xa0] sm:$0xff]
      %v194 = vld [vmem:[#allocation8 + $0xa8] sm:$0xff]
      %v195 = vld [vmem:[#allocation8 + $0xb0] sm:$0xff]
      %v196 = vld [vmem:[#allocation8 + $0xb8] sm:$0xff]
      %v197 = vld [vmem:[#allocation8 + $0xc0] sm:$0xff]
      %v198 = vld [vmem:[#allocation8 + $0xc8] sm:$0xff]
      %v199 = vld [vmem:[#allocation8 + $0xd0] sm:$0xff]
      %v200 = vld [vmem:[#allocation8 + $0xd8] sm:$0xff]
      %v201 = vld [vmem:[#allocation8 + $0xe0] sm:$0xff]
      %v202 = vld [vmem:[#allocation8 + $0xe8] sm:$0xff]
      %v203 = vld [vmem:[#allocation8 + $0xf0] sm:$0xff]
      %v204 = vld [vmem:[#allocation8 + $0xf8] sm:$0xff]
      %v205 = vld [vmem:[%s4] sm:$0x3]
      %v207 = vlaneseq
      %v208 = vshrl.u32 %v207, 7
      %v209 = vsub.s32 0, %v208
      %v210 = vrot.slane %v205, %v209
      %v211 = vlaneseq
      %v212 = vshrl.u32 %v211, 7
      %v213 = vsub.s32 1, %v212
      %v214 = vrot.slane %v205, %v213
      %v249 = vunpack.c.l.b16 %v173
      %v250 = vunpack.c.h.b16 %v173
      %v251 = vunpack.c.l.b16 %v174
      %v252 = vunpack.c.h.b16 %v174
      %v253 = vunpack.c.l.b16 %v175
      %v254 = vunpack.c.h.b16 %v175
      %v255 = vunpack.c.l.b16 %v176
      %v256 = vunpack.c.h.b16 %v176
      %v257 = vunpack.c.l.b16 %v177
      %v258 = vunpack.c.h.b16 %v177
      %v259 = vunpack.c.l.b16 %v178
      %v260 = vunpack.c.h.b16 %v178
      %v261 = vunpack.c.l.b16 %v179
      %v262 = vunpack.c.h.b16 %v179
      %v263 = vunpack.c.l.b16 %v180
      %v264 = vunpack.c.h.b16 %v180
      %v265 = vunpack.c.l.b16 %v181
      %v266 = vunpack.c.h.b16 %v181
      %v267 = vunpack.c.l.b16 %v182
      %v268 = vunpack.c.h.b16 %v182
      %v269 = vunpack.c.l.b16 %v183
      %v270 = vunpack.c.h.b16 %v183
      %v271 = vunpack.c.l.b16 %v184
      %v272 = vunpack.c.h.b16 %v184
      %v273 = vunpack.c.l.b16 %v185
      %v274 = vunpack.c.h.b16 %v185
      %v275 = vunpack.c.l.b16 %v186
      %v276 = vunpack.c.h.b16 %v186
      %v277 = vunpack.c.l.b16 %v187
      %v278 = vunpack.c.h.b16 %v187
      %v279 = vunpack.c.l.b16 %v188
      %v280 = vunpack.c.h.b16 %v188
      %v281 = vunpack.c.l.b16 %v189
      %v282 = vunpack.c.h.b16 %v189
      %v283 = vunpack.c.l.b16 %v190
      %v284 = vunpack.c.h.b16 %v190
      %v285 = vunpack.c.l.b16 %v191
      %v286 = vunpack.c.h.b16 %v191
      %v287 = vunpack.c.l.b16 %v192
      %v288 = vunpack.c.h.b16 %v192
      %v289 = vunpack.c.l.b16 %v193
      %v290 = vunpack.c.h.b16 %v193
      %v291 = vunpack.c.l.b16 %v194
      %v292 = vunpack.c.h.b16 %v194
      %v293 = vunpack.c.l.b16 %v195
      %v294 = vunpack.c.h.b16 %v195
      %v295 = vunpack.c.l.b16 %v196
      %v296 = vunpack.c.h.b16 %v196
      %v297 = vunpack.c.l.b16 %v197
      %v298 = vunpack.c.h.b16 %v197
      %v299 = vunpack.c.l.b16 %v198
      %v300 = vunpack.c.h.b16 %v198
      %v301 = vunpack.c.l.b16 %v199
      %v302 = vunpack.c.h.b16 %v199
      %v303 = vunpack.c.l.b16 %v200
      %v304 = vunpack.c.h.b16 %v200
      %v305 = vunpack.c.l.b16 %v201
      %v306 = vunpack.c.h.b16 %v201
      %v307 = vunpack.c.l.b16 %v202
      %v308 = vunpack.c.h.b16 %v202
      %v309 = vunpack.c.l.b16 %v203
      %v310 = vunpack.c.h.b16 %v203
      %v311 = vunpack.c.l.b16 %v204
      %v312 = vunpack.c.h.b16 %v204
      %v313 = vpack.c.b16 %v251, %v249
      %v314 = vpack.c.b16 %v252, %v250
      %v315 = vpack.c.b16 %v255, %v253
      %v316 = vpack.c.b16 %v256, %v254
      %v317 = vpack.c.b16 %v259, %v257
      %v318 = vpack.c.b16 %v260, %v258
      %v319 = vpack.c.b16 %v263, %v261
      %v320 = vpack.c.b16 %v264, %v262
      %v321 = vpack.c.b16 %v267, %v265
      %v322 = vpack.c.b16 %v268, %v266
      %v323 = vpack.c.b16 %v271, %v269
      %v324 = vpack.c.b16 %v272, %v270
      %v325 = vpack.c.b16 %v275, %v273
      %v326 = vpack.c.b16 %v276, %v274
      %v327 = vpack.c.b16 %v279, %v277
      %v328 = vpack.c.b16 %v280, %v278
      %v329 = vpack.c.b16 %v283, %v281
      %v330 = vpack.c.b16 %v284, %v282
      %v331 = vpack.c.b16 %v287, %v285
      %v332 = vpack.c.b16 %v288, %v286
      %v333 = vpack.c.b16 %v291, %v289
      %v334 = vpack.c.b16 %v292, %v290
      %v335 = vpack.c.b16 %v295, %v293
      %v336 = vpack.c.b16 %v296, %v294
      %v337 = vpack.c.b16 %v299, %v297
      %v338 = vpack.c.b16 %v300, %v298
      %v339 = vpack.c.b16 %v303, %v301
      %v340 = vpack.c.b16 %v304, %v302
      %v341 = vpack.c.b16 %v307, %v305
      %v342 = vpack.c.b16 %v308, %v306
      %v343 = vpack.c.b16 %v311, %v309
      %v344 = vpack.c.b16 %v312, %v310
      %377 = vmatprep.subr.bf16.mxu0 %v328
      %378 = vmatpush1.bf16.msra.mxu0 %v327
      %379 = vmatprep.subr.bf16.mxu0 %v326
      %380 = vmatpush1.bf16.msra.mxu0 %v325
      %381 = vmatprep.subr.bf16.mxu0 %v324
      %382 = vmatpush1.bf16.msra.mxu0 %v323
      %383 = vmatprep.subr.bf16.mxu0 %v322
      %384 = vmatpush1.bf16.msra.mxu0 %v321
      %385 = vmatprep.subr.bf16.mxu0 %v320
      %386 = vmatpush1.bf16.msra.mxu0 %v319
      %387 = vmatprep.subr.bf16.mxu0 %v318
      %388 = vmatpush1.bf16.msra.mxu0 %v317
      %389 = vmatprep.subr.bf16.mxu0 %v316
      %390 = vmatpush1.bf16.msra.mxu0 %v315
      %391 = vmatprep.subr.bf16.mxu0 %v314
      %392 = vmatpush1.bf16.msra.mxu0 %v313
      %393 = vmatprep.subr.bf16.mxu0 %v344
      %394 = vmatpush2.bf16.msra.mxu0 %v343
      %395 = vmatprep.subr.bf16.mxu0 %v342
      %396 = vmatpush2.bf16.msra.mxu0 %v341
      %397 = vmatprep.subr.bf16.mxu0 %v340
      %398 = vmatpush2.bf16.msra.mxu0 %v339
      %399 = vmatprep.subr.bf16.mxu0 %v338
      %400 = vmatpush2.bf16.msra.mxu0 %v337
      %401 = vmatprep.subr.bf16.mxu0 %v336
      %402 = vmatpush2.bf16.msra.mxu0 %v335
      %403 = vmatprep.subr.bf16.mxu0 %v334
      %404 = vmatpush2.bf16.msra.mxu0 %v333
      %405 = vmatprep.subr.bf16.mxu0 %v332
      %406 = vmatpush2.bf16.msra.mxu0 %v331
      %407 = vmatprep.subr.bf16.mxu0 %v330
      %408 = vmatpush2.bf16.msra.mxu0 %v329
      %409 = vmatprep.mubr.bf16.mxu0 %v172
      %410 = vmatmul.mubr.bf16.gmra.mxu0 %v171
      %v411 = vpop.f32.mrf.mxu0
      %v412 = vadd.f32 %v210, %v411
      %v413 = vpop.f32.mrf.mxu0
      %v414 = vadd.f32 %v214, %v413
      %v415 = vpop.f32.mrf.mxu0
      %v416 = vpop.f32.mrf.mxu0
      %417 = vdwg.mxu0
      %v418 = vmax.f32 %v412, 0.0
      %v419 = vmax.f32 %v414, 0.0
      %v420 = vpack.c.bf16 %v418, %v418
      %v421 = vpack.c.bf16 %v419, %v419
      %v422 = vld [vmem:[#allocation9] sm:$0xff]
      %v423 = vld [vmem:[#allocation9 + $0x8] sm:$0xff]
      %v424 = vld [vmem:[#allocation9 + $0x10] sm:$0xff]
      %v425 = vld [vmem:[#allocation9 + $0x18] sm:$0xff]
      %v426 = vld [vmem:[#allocation9 + $0x20] sm:$0xff]
      %v427 = vld [vmem:[#allocation9 + $0x28] sm:$0xff]
      %v428 = vld [vmem:[#allocation9 + $0x30] sm:$0xff]
      %v429 = vld [vmem:[#allocation9 + $0x38] sm:$0xff]
      %v430 = vld [vmem:[#allocation9 + $0x40] sm:$0xff]
      %v431 = vld [vmem:[#allocation9 + $0x48] sm:$0xff]
      %v432 = vld [vmem:[#allocation9 + $0x50] sm:$0xff]
      %v433 = vld [vmem:[#allocation9 + $0x58] sm:$0xff]
      %v434 = vld [vmem:[#allocation9 + $0x60] sm:$0xff]
      %v435 = vld [vmem:[#allocation9 + $0x68] sm:$0xff]
      %v436 = vld [vmem:[#allocation9 + $0x70] sm:$0xff]
      %v437 = vld [vmem:[#allocation9 + $0x78] sm:$0xff]
      %v438 = vld [vmem:[#allocation9 + $0x80] sm:$0xff]
      %v439 = vld [vmem:[#allocation9 + $0x88] sm:$0xff]
      %v440 = vld [vmem:[#allocation9 + $0x90] sm:$0xff]
      %v441 = vld [vmem:[#allocation9 + $0x98] sm:$0xff]
      %v442 = vld [vmem:[#allocation9 + $0xa0] sm:$0xff]
      %v443 = vld [vmem:[#allocation9 + $0xa8] sm:$0xff]
      %v444 = vld [vmem:[#allocation9 + $0xb0] sm:$0xff]
      %v445 = vld [vmem:[#allocation9 + $0xb8] sm:$0xff]
      %v446 = vld [vmem:[#allocation9 + $0xc0] sm:$0xff]
      %v447 = vld [vmem:[#allocation9 + $0xc8] sm:$0xff]
      %v448 = vld [vmem:[#allocation9 + $0xd0] sm:$0xff]
      %v449 = vld [vmem:[#allocation9 + $0xd8] sm:$0xff]
      %v450 = vld [vmem:[#allocation9 + $0xe0] sm:$0xff]
      %v451 = vld [vmem:[#allocation9 + $0xe8] sm:$0xff]
      %v452 = vld [vmem:[#allocation9 + $0xf0] sm:$0xff]
      %v453 = vld [vmem:[#allocation9 + $0xf8] sm:$0xff]
      %v454 = vld [vmem:[%s6] sm:$0x3]
      %v456 = vlaneseq
      %v457 = vshrl.u32 %v456, 7
      %v458 = vsub.s32 0, %v457
      %v459 = vrot.slane %v454, %v458
      %v460 = vlaneseq
      %v461 = vshrl.u32 %v460, 7
      %v462 = vsub.s32 1, %v461
      %v463 = vrot.slane %v454, %v462
      %v498 = vunpack.c.l.b16 %v422
      %v499 = vunpack.c.h.b16 %v422
      %v500 = vunpack.c.l.b16 %v423
      %v501 = vunpack.c.h.b16 %v423
      %v502 = vunpack.c.l.b16 %v424
      %v503 = vunpack.c.h.b16 %v424
      %v504 = vunpack.c.l.b16 %v425
      %v505 = vunpack.c.h.b16 %v425
      %v506 = vunpack.c.l.b16 %v426
      %v507 = vunpack.c.h.b16 %v426
      %v508 = vunpack.c.l.b16 %v427
      %v509 = vunpack.c.h.b16 %v427
      %v510 = vunpack.c.l.b16 %v428
      %v511 = vunpack.c.h.b16 %v428
      %v512 = vunpack.c.l.b16 %v429
      %v513 = vunpack.c.h.b16 %v429
      %v514 = vunpack.c.l.b16 %v430
      %v515 = vunpack.c.h.b16 %v430
      %v516 = vunpack.c.l.b16 %v431
      %v517 = vunpack.c.h.b16 %v431
      %v518 = vunpack.c.l.b16 %v432
      %v519 = vunpack.c.h.b16 %v432
      %v520 = vunpack.c.l.b16 %v433
      %v521 = vunpack.c.h.b16 %v433
      %v522 = vunpack.c.l.b16 %v434
      %v523 = vunpack.c.h.b16 %v434
      %v524 = vunpack.c.l.b16 %v435
      %v525 = vunpack.c.h.b16 %v435
      %v526 = vunpack.c.l.b16 %v436
      %v527 = vunpack.c.h.b16 %v436
      %v528 = vunpack.c.l.b16 %v437
      %v529 = vunpack.c.h.b16 %v437
      %v530 = vunpack.c.l.b16 %v438
      %v531 = vunpack.c.h.b16 %v438
      %v532 = vunpack.c.l.b16 %v439
      %v533 = vunpack.c.h.b16 %v439
      %v534 = vunpack.c.l.b16 %v440
      %v535 = vunpack.c.h.b16 %v440
      %v536 = vunpack.c.l.b16 %v441
      %v537 = vunpack.c.h.b16 %v441
      %v538 = vunpack.c.l.b16 %v442
      %v539 = vunpack.c.h.b16 %v442
      %v540 = vunpack.c.l.b16 %v443
      %v541 = vunpack.c.h.b16 %v443
      %v542 = vunpack.c.l.b16 %v444
      %v543 = vunpack.c.h.b16 %v444
      %v544 = vunpack.c.l.b16 %v445
      %v545 = vunpack.c.h.b16 %v445
      %v546 = vunpack.c.l.b16 %v446
      %v547 = vunpack.c.h.b16 %v446
      %v548 = vunpack.c.l.b16 %v447
      %v549 = vunpack.c.h.b16 %v447
      %v550 = vunpack.c.l.b16 %v448
      %v551 = vunpack.c.h.b16 %v448
      %v552 = vunpack.c.l.b16 %v449
      %v553 = vunpack.c.h.b16 %v449
      %v554 = vunpack.c.l.b16 %v450
      %v555 = vunpack.c.h.b16 %v450
      %v556 = vunpack.c.l.b16 %v451
      %v557 = vunpack.c.h.b16 %v451
      %v558 = vunpack.c.l.b16 %v452
      %v559 = vunpack.c.h.b16 %v452
      %v560 = vunpack.c.l.b16 %v453
      %v561 = vunpack.c.h.b16 %v453
      %v562 = vpack.c.b16 %v500, %v498
      %v563 = vpack.c.b16 %v501, %v499
      %v564 = vpack.c.b16 %v504, %v502
      %v565 = vpack.c.b16 %v505, %v503
      %v566 = vpack.c.b16 %v508, %v506
      %v567 = vpack.c.b16 %v509, %v507
      %v568 = vpack.c.b16 %v512, %v510
      %v569 = vpack.c.b16 %v513, %v511
      %v570 = vpack.c.b16 %v516, %v514
      %v571 = vpack.c.b16 %v517, %v515
      %v572 = vpack.c.b16 %v520, %v518
      %v573 = vpack.c.b16 %v521, %v519
      %v574 = vpack.c.b16 %v524, %v522
      %v575 = vpack.c.b16 %v525, %v523
      %v576 = vpack.c.b16 %v528, %v526
      %v577 = vpack.c.b16 %v529, %v527
      %v578 = vpack.c.b16 %v532, %v530
      %v579 = vpack.c.b16 %v533, %v531
      %v580 = vpack.c.b16 %v536, %v534
      %v581 = vpack.c.b16 %v537, %v535
      %v582 = vpack.c.b16 %v540, %v538
      %v583 = vpack.c.b16 %v541, %v539
      %v584 = vpack.c.b16 %v544, %v542
      %v585 = vpack.c.b16 %v545, %v543
      %v586 = vpack.c.b16 %v548, %v546
      %v587 = vpack.c.b16 %v549, %v547
      %v588 = vpack.c.b16 %v552, %v550
      %v589 = vpack.c.b16 %v553, %v551
      %v590 = vpack.c.b16 %v556, %v554
      %v591 = vpack.c.b16 %v557, %v555
      %v592 = vpack.c.b16 %v560, %v558
      %v593 = vpack.c.b16 %v561, %v559
      %626 = vmatprep.subr.bf16.mxu0 %v577
      %627 = vmatpush1.bf16.msra.mxu0 %v576
      %628 = vmatprep.subr.bf16.mxu0 %v575
      %629 = vmatpush1.bf16.msra.mxu0 %v574
      %630 = vmatprep.subr.bf16.mxu0 %v573
      %631 = vmatpush1.bf16.msra.mxu0 %v572
      %632 = vmatprep.subr.bf16.mxu0 %v571
      %633 = vmatpush1.bf16.msra.mxu0 %v570
      %634 = vmatprep.subr.bf16.mxu0 %v569
      %635 = vmatpush1.bf16.msra.mxu0 %v568
      %636 = vmatprep.subr.bf16.mxu0 %v567
      %637 = vmatpush1.bf16.msra.mxu0 %v566
      %638 = vmatprep.subr.bf16.mxu0 %v565
      %639 = vmatpush1.bf16.msra.mxu0 %v564
      %640 = vmatprep.subr.bf16.mxu0 %v563
      %641 = vmatpush1.bf16.msra.mxu0 %v562
      %642 = vmatprep.subr.bf16.mxu0 %v593
      %643 = vmatpush2.bf16.msra.mxu0 %v592
      %644 = vmatprep.subr.bf16.mxu0 %v591
      %645 = vmatpush2.bf16.msra.mxu0 %v590
      %646 = vmatprep.subr.bf16.mxu0 %v589
      %647 = vmatpush2.bf16.msra.mxu0 %v588
      %648 = vmatprep.subr.bf16.mxu0 %v587
      %649 = vmatpush2.bf16.msra.mxu0 %v586
      %650 = vmatprep.subr.bf16.mxu0 %v585
      %651 = vmatpush2.bf16.msra.mxu0 %v584
      %652 = vmatprep.subr.bf16.mxu0 %v583
      %653 = vmatpush2.bf16.msra.mxu0 %v582
      %654 = vmatprep.subr.bf16.mxu0 %v581
      %655 = vmatpush2.bf16.msra.mxu0 %v580
      %656 = vmatprep.subr.bf16.mxu0 %v579
      %657 = vmatpush2.bf16.msra.mxu0 %v578
      %658 = vmatprep.mubr.bf16.mxu0 %v421
      %659 = vmatmul.mubr.bf16.gmra.mxu0 %v420
      %v660 = vpop.f32.mrf.mxu0
      %v661 = vadd.f32 %v459, %v660
      %v662 = vpop.f32.mrf.mxu0
      %v663 = vadd.f32 %v463, %v662
      %v664 = vpop.f32.mrf.mxu0
      %v665 = vpop.f32.mrf.mxu0
      %666 = vdwg.mxu0
      %667 = vst [vmem:[#allocation11] sm:$0xff] %v661
      %668 = vst [vmem:[#allocation11 + $0x8] sm:$0xff] %v663
    $region53: #{tpu_custom_call.1} parent=1 // pred_fallthru
      _
    // Predicated region
    $region54: #{tpu_custom_call.1} parent=1 // pred_check
      _
    $region55: #{tpu_custom_call.1} parent=1 // pred_check_branch
      %670 = sbr.rel (0) target = $region57
    $region56: #{tpu_custom_call.1} parent=1 // pred_region
      %s672 = ssub.s32 256, 256
      %673 = vsyncadd [#allocation5], %s672
      %s675 = sshll.u32 [#allocation11], 4
      %s676 = int_to_ptr.vmem [resolvable:$true] %s675
      %678 = dma.vmem_to_hbm [thread:$0]  %s676, 256, %s7, [#allocation5]
    $region57: #{tpu_custom_call.1} parent=1 // pred_fallthru
      _
    // Predicated region
    $region58: #{tpu_custom_call.1} parent=1 // pred_check
      _
    $region59: #{tpu_custom_call.1} parent=1 // pred_check_branch
      %680 = sbr.rel (0) target = $region61
    $region60: #{tpu_custom_call.1} parent=1 // pred_region
      %681 = dma.done [#allocation5], 256
    $region61: #{tpu_custom_call.1} parent=1 // pred_fallthru
      _
    %682 = vsyncpa [#allocation4], 1
    %683 = vsyncpa [#allocation7], 1
    %684 = vsyncpa [#allocation10], 1
    %685 = vsyncpa [#allocation5], 1

// kernel: tpu_custom_call.1
$region0: #{tpu_custom_call.1}
  #allocation0 [shape = 'u32[]', space=smem, size = 0x4, offset = 0x4, fixed_abs, tag = 'smem constant byte address 0x4 - core index']
  #allocation1 [shape = 'u32[144,128]{1,0:T(1,128)}', space=vmem, size = 0x12000, scoped, tag = 'internal scratch']
  #allocation2 [shape = 'f32[8,256]{1,0:T(8,128)}', space=vmem, size = 0x2000, scoped, tag = 'scratch operand']
  %s0 = inlined_call_operand.hbm [shape: bf16[8,8], index: 0, kind: input, shape index: {}]
  %s1 = inlined_call_operand.hbm [shape: bf16[8,256], index: 1, kind: input, shape index: {}]
  %s2 = inlined_call_operand.vmem [shape: f32[1,256], index: 2, kind: input, shape index: {}]
  %s3 = inlined_call_operand.hbm [shape: bf16[256,256], index: 3, kind: input, shape index: {}]
  %s4 = inlined_call_operand.vmem [shape: f32[1,256], index: 4, kind: input, shape index: {}]
  %s5 = inlined_call_operand.hbm [shape: bf16[256,256], index: 5, kind: input, shape index: {}]
  %s6 = inlined_call_operand.vmem [shape: f32[1,256], index: 6, kind: input, shape index: {}]
  %s7 = inlined_call_operand.hbm [shape: f32[8,256], index: 7, kind: output, shape index: {}]
  %s8 = sld [smem:[#allocation0]]
  $region62: #{tpu_custom_call.1} parent=0
    _
  %s10 = ssub.s32 1, %s8
  %s11 = scalar_select 0, %s10, %s8
  $region1: #{tpu_custom_call.1} parent=0
    #allocation3 [shape = 'u8[2048]{0}', space=vmem, size = 0x800, scoped, tag = 'input window, operand 0, single buffered']
    #allocation4 [shape = 's32[1]{0}', space=sflag, size = 0x4, scoped, tag = 'scoped memory for tpu_custom_call.1']
    #allocation5 [shape = 's32[1]{0}', space=sflag, size = 0x4, scoped, tag = 'scoped memory for tpu_custom_call.1']
    #allocation6 [shape = 'u8[4096]{0}', space=vmem, size = 0x1000, scoped, tag = 'input window, operand 1, single buffered']
    #allocation7 [shape = 's32[1]{0}', space=sflag, size = 0x4, scoped, tag = 'scoped memory for tpu_custom_call.1']
    #allocation8 [shape = 'u8[131072]{0}', space=vmem, size = 0x20000, scoped, tag = 'input window, operand 3, single buffered']
    #allocation9 [shape = 'u8[131072]{0}', space=vmem, size = 0x20000, scoped, tag = 'input window, operand 5, single buffered']
    #allocation10 [shape = 's32[1]{0}', space=sflag, size = 0x4, scoped, tag = 'scoped memory for tpu_custom_call.1']
    #allocation11 [shape = 'u8[8192]{0}', space=vmem, size = 0x2000, scoped, tag = 'output window, operand 0, single buffered']
    %12 = vsyncpa [#allocation4], 0
    %13 = vsyncpa [#allocation7], 0
    %14 = vsyncpa [#allocation10], 0
    %15 = vsyncpa [#allocation5], 0
    // Predicated region
    $region2: #{tpu_custom_call.1} parent=1 // pred_check
      _
    $region3: #{tpu_custom_call.1} parent=1 // pred_check_branch
      %17 = sbr.rel (0) target = $region5
    $region4: #{tpu_custom_call.1} parent=1 // pred_region
      %s19 = ssub.s32 64, 64
      %20 = vsyncadd [#allocation4], %s19
      %s22 = sshll.u32 [#allocation3], 4
      %s23 = int_to_ptr.vmem [resolvable:$true] %s22
      %25 = dma.hbm_to_vmem [thread:$0]  %s0, 64, %s23, [#allocation4]
    $region5: #{tpu_custom_call.1} parent=1 // pred_fallthru
      _
    // Predicated region
    $region6: #{tpu_custom_call.1} parent=1 // pred_check
      _
    $region7: #{tpu_custom_call.1} parent=1 // pred_check_branch
      %27 = sbr.rel (0) target = $region9
    $region8: #{tpu_custom_call.1} parent=1 // pred_region
      %s29 = ssub.s32 128, 128
      %30 = vsyncadd [#allocation7], %s29
      %s32 = sshll.u32 [#allocation6], 4
      %s33 = int_to_ptr.vmem [resolvable:$true] %s32
      %35 = dma.hbm_to_vmem [thread:$0]  %s1, 128, %s33, [#allocation7]
    $region9: #{tpu_custom_call.1} parent=1 // pred_fallthru
      _
    // Predicated region
    $region10: #{tpu_custom_call.1} parent=1 // pred_check
      _
    $region11: #{tpu_custom_call.1} parent=1 // pred_check_branch
      %37 = sbr.rel (0) target = $region13
    $region12: #{tpu_custom_call.1} parent=1 // pred_region
      _
    $region13: #{tpu_custom_call.1} parent=1 // pred_fallthru
      _
    // Predicated region
    $region14: #{tpu_custom_call.1} parent=1 // pred_check
      _
    $region15: #{tpu_custom_call.1} parent=1 // pred_check_branch
      %39 = sbr.rel (0) target = $region17
    $region16: #{tpu_custom_call.1} parent=1 // pred_region
      %s41 = ssub.s32 4096, 4096
      %42 = vsyncadd [#allocation7], %s41
      %s43 = sshll.u32 [#allocation8], 4
      %s44 = int_to_ptr.vmem [resolvable:$true] %s43
      %49 = dma.hbm_to_vmem [thread:$0]  %s3, 4096, %s44, [#allocation7], 128, 128, 8
    $region17: #{tpu_custom_call.1} parent=1 // pred_fallthru
      _
    // Predicated region
    $region18: #{tpu_custom_call.1} parent=1 // pred_check
      _
    $region19: #{tpu_custom_call.1} parent=1 // pred_check_branch
      %51 = sbr.rel (0) target = $region21
    $region20: #{tpu_custom_call.1} parent=1 // pred_region
      _
    $region21: #{tpu_custom_call.1} parent=1 // pred_fallthru
      _
    // Predicated region
    $region22: #{tpu_custom_call.1} parent=1 // pred_check
      _
    $region23: #{tpu_custom_call.1} parent=1 // pred_check_branch
      %53 = sbr.rel (0) target = $region25
    $region24: #{tpu_custom_call.1} parent=1 // pred_region
      %s55 = ssub.s32 4096, 4096
      %56 = vsyncadd [#allocation10], %s55
      %s57 = sshll.u32 [#allocation9], 4
      %s58 = int_to_ptr.vmem [resolvable:$true] %s57
      %63 = dma.hbm_to_vmem [thread:$0]  %s5, 4096, %s58, [#allocation10], 128, 128, 8
    $region25: #{tpu_custom_call.1} parent=1 // pred_fallthru
      _
    // Predicated region
    $region26: #{tpu_custom_call.1} parent=1 // pred_check
      _
    $region27: #{tpu_custom_call.1} parent=1 // pred_check_branch
      %65 = sbr.rel (0) target = $region29
    $region28: #{tpu_custom_call.1} parent=1 // pred_region
      _
    $region29: #{tpu_custom_call.1} parent=1 // pred_fallthru
      _
    // Predicated region
    $region30: #{tpu_custom_call.1} parent=1 // pred_check
      _
    $region31: #{tpu_custom_call.1} parent=1 // pred_check_branch
      %67 = sbr.rel (0) target = $region33
    $region32: #{tpu_custom_call.1} parent=1 // pred_region
      %68 = dma.done [#allocation4], 64
    $region33: #{tpu_custom_call.1} parent=1 // pred_fallthru
      _
    // Predicated region
    $region34: #{tpu_custom_call.1} parent=1 // pred_check
      _
    $region35: #{tpu_custom_call.1} parent=1 // pred_check_branch
      %70 = sbr.rel (0) target = $region37
    $region36: #{tpu_custom_call.1} parent=1 // pred_region
      %71 = dma.done [#allocation7], 128
    $region37: #{tpu_custom_call.1} parent=1 // pred_fallthru
      _
    // Predicated region
    $region38: #{tpu_custom_call.1} parent=1 // pred_check
      _
    $region39: #{tpu_custom_call.1} parent=1 // pred_check_branch
      %73 = sbr.rel (0) target = $region41
    $region40: #{tpu_custom_call.1} parent=1 // pred_region
      %74 = dma.done [#allocation7], 4096
    $region41: #{tpu_custom_call.1} parent=1 // pred_fallthru
      _
    // Predicated region
    $region42: #{tpu_custom_call.1} parent=1 // pred_check
      _
    $region43: #{tpu_custom_call.1} parent=1 // pred_check_branch
      %76 = sbr.rel (0) target = $region45
    $region44: #{tpu_custom_call.1} parent=1 // pred_region
      %77 = dma.done [#allocation10], 4096
    $region45: #{tpu_custom_call.1} parent=1 // pred_fallthru
      _
    %p79 = scmp.eq.s32.totalorder 0, 0
    // Predicated region
    $region46: #{tpu_custom_call.1} parent=1 // pred_check
      %p80 = pneg %p79
    $region47: #{tpu_custom_call.1} parent=1 // pred_check_branch
      %82 = sbr.rel (%p80) target = $region49
    $region48: #{tpu_custom_call.1} parent=1 // pred_region
      %83 = vst [vmem:[#allocation2] sm:$0xff] 0.0
      %84 = vst [vmem:[#allocation2 + $0x8] sm:$0xff] 0.0
    $region49: #{tpu_custom_call.1} parent=1 // pred_fallthru
      _
    %v85 = vld [vmem:[#allocation2] sm:$0xff]
    %v86 = vld [vmem:[#allocation2 + $0x8] sm:$0xff]
    %v87 = vld [vmem:[#allocation3] sm:$0xf]
    %v88 = vld [vmem:[#allocation6] sm:$0xff]
    %v90 = vunpack.c.l.b16 %v88
    %v91 = vunpack.c.h.b16 %v88
    %v92 = vpack.c.b16 %v90, %v90
    %v93 = vpack.c.b16 %v91, %v91
    %vm94 = vcmask 64512
    %v96 = vsel %vm94, %v87, 0
    %vm98 = vcmask 1043456
    %v100 = vsel %vm98, %v92, 0
    %v103 = vsel %vm98, %v93, 0
    %105 = vmatprep.subr.bf16.mxu0 0
    %106 = vmatpush1.bf16.msra.mxu0 0
    %107 = vmatprep.subr.bf16.mxu0 0
    %108 = vmatpush1.bf16.msra.mxu0 0
    %109 = vmatprep.subr.bf16.mxu0 0
    %110 = vmatpush1.bf16.msra.mxu0 0
    %111 = vmatprep.subr.bf16.mxu0 0
    %112 = vmatpush1.bf16.msra.mxu0 0
    %113 = vmatprep.subr.bf16.mxu0 0
    %114 = vmatpush1.bf16.msra.mxu0 0
    %115 = vmatprep.subr.bf16.mxu0 0
    %116 = vmatpush1.bf16.msra.mxu0 0
    %117 = vmatprep.subr.bf16.mxu0 0
    %118 = vmatpush1.bf16.msra.mxu0 0
    %119 = vmatprep.subr.bf16.mxu0 %v103
    %120 = vmatpush1.bf16.msra.mxu0 %v100
    %121 = vmatprep.subr.bf16.mxu0 0
    %122 = vmatpush2.bf16.msra.mxu0 0
    %123 = vmatprep.subr.bf16.mxu0 0
    %124 = vmatpush2.bf16.msra.mxu0 0
    %125 = vmatprep.subr.bf16.mxu0 0
    %126 = vmatpush2.bf16.msra.mxu0 0
    %127 = vmatprep.subr.bf16.mxu0 0
    %128 = vmatpush2.bf16.msra.mxu0 0
    %129 = vmatprep.subr.bf16.mxu0 0
    %130 = vmatpush2.bf16.msra.mxu0 0
    %131 = vmatprep.subr.bf16.mxu0 0
    %132 = vmatpush2.bf16.msra.mxu0 0
    %133 = vmatprep.subr.bf16.mxu0 0
    %134 = vmatpush2.bf16.msra.mxu0 0
    %135 = vmatprep.subr.bf16.mxu0 0
    %136 = vmatpush2.bf16.msra.mxu0 0
    %137 = vmatprep.mubr.bf16.mxu0 0
    %138 = vmatmul.mubr.bf16.gmra.mxu0 %v96
    %v139 = vpop.f32.mrf.mxu0
    %v140 = vadd.f32 0.0, %v139
    %v141 = vpop.f32.mrf.mxu0
    %v142 = vadd.f32 0.0, %v141
    %v143 = vpop.f32.mrf.mxu0
    %v144 = vpop.f32.mrf.mxu0
    %145 = vdwg.mxu0
    %v146 = vadd.f32 %v85, %v140
    %v147 = vadd.f32 %v86, %v142
    %148 = vst [vmem:[#allocation2] sm:$0xff] %v146
    %149 = vst [vmem:[#allocation2 + $0x8] sm:$0xff] %v147
    // Predicated region
    $region50: #{tpu_custom_call.1} parent=1 // pred_check
      %p150 = pneg %p79
    $region51: #{tpu_custom_call.1} parent=1 // pred_check_branch
      %152 = sbr.rel (%p150) target = $region53
    $region52: #{tpu_custom_call.1} parent=1 // pred_region
      %v153 = vld [vmem:[#allocation2] sm:$0xff]
      %v154 = vld [vmem:[#allocation2 + $0x8] sm:$0xff]
      %v155 = vld [vmem:[%s2] sm:$0x3]
      %v157 = vlaneseq
      %v158 = vshrl.u32 %v157, 7
      %v159 = vsub.s32 0, %v158
      %v160 = vrot.slane %v155, %v159
      %v161 = vlaneseq
      %v162 = vshrl.u32 %v161, 7
      %v163 = vsub.s32 1, %v162
      %v164 = vrot.slane %v155, %v163
      %v167 = vadd.f32 %v153, %v160
      %v168 = vadd.f32 %v154, %v164
      %v169 = vmax.f32 %v167, 0.0
      %v170 = vmax.f32 %v168, 0.0
      %v171 = vpack.c.bf16 %v169, %v169
      %v172 = vpack.c.bf16 %v170, %v170
      %v173 = vld [vmem:[#allocation8] sm:$0xff]
      %v174 = vld [vmem:[#allocation8 + $0x8] sm:$0xff]
      %v175 = vld [vmem:[#allocation8 + $0x10] sm:$0xff]
      %v176 = vld [vmem:[#allocation8 + $0x18] sm:$0xff]
      %v177 = vld [vmem:[#allocation8 + $0x20] sm:$0xff]
      %v178 = vld [vmem:[#allocation8 + $0x28] sm:$0xff]
      %v179 = vld [vmem:[#allocation8 + $0x30] sm:$0xff]
      %v180 = vld [vmem:[#allocation8 + $0x38] sm:$0xff]
      %v181 = vld [vmem:[#allocation8 + $0x40] sm:$0xff]
      %v182 = vld [vmem:[#allocation8 + $0x48] sm:$0xff]
      %v183 = vld [vmem:[#allocation8 + $0x50] sm:$0xff]
      %v184 = vld [vmem:[#allocation8 + $0x58] sm:$0xff]
      %v185 = vld [vmem:[#allocation8 + $0x60] sm:$0xff]
      %v186 = vld [vmem:[#allocation8 + $0x68] sm:$0xff]
      %v187 = vld [vmem:[#allocation8 + $0x70] sm:$0xff]
      %v188 = vld [vmem:[#allocation8 + $0x78] sm:$0xff]
      %v189 = vld [vmem:[#allocation8 + $0x80] sm:$0xff]
      %v190 = vld [vmem:[#allocation8 + $0x88] sm:$0xff]
      %v191 = vld [vmem:[#allocation8 + $0x90] sm:$0xff]
      %v192 = vld [vmem:[#allocation8 + $0x98] sm:$0xff]
      %v193 = vld [vmem:[#allocation8 + $0xa0] sm:$0xff]
      %v194 = vld [vmem:[#allocation8 + $0xa8] sm:$0xff]
      %v195 = vld [vmem:[#allocation8 + $0xb0] sm:$0xff]
      %v196 = vld [vmem:[#allocation8 + $0xb8] sm:$0xff]
      %v197 = vld [vmem:[#allocation8 + $0xc0] sm:$0xff]
      %v198 = vld [vmem:[#allocation8 + $0xc8] sm:$0xff]
      %v199 = vld [vmem:[#allocation8 + $0xd0] sm:$0xff]
      %v200 = vld [vmem:[#allocation8 + $0xd8] sm:$0xff]
      %v201 = vld [vmem:[#allocation8 + $0xe0] sm:$0xff]
      %v202 = vld [vmem:[#allocation8 + $0xe8] sm:$0xff]
      %v203 = vld [vmem:[#allocation8 + $0xf0] sm:$0xff]
      %v204 = vld [vmem:[#allocation8 + $0xf8] sm:$0xff]
      %v205 = vld [vmem:[%s4] sm:$0x3]
      %v207 = vlaneseq
      %v208 = vshrl.u32 %v207, 7
      %v209 = vsub.s32 0, %v208
      %v210 = vrot.slane %v205, %v209
      %v211 = vlaneseq
      %v212 = vshrl.u32 %v211, 7
      %v213 = vsub.s32 1, %v212
      %v214 = vrot.slane %v205, %v213
      %v249 = vunpack.c.l.b16 %v173
      %v250 = vunpack.c.h.b16 %v173
      %v251 = vunpack.c.l.b16 %v174
      %v252 = vunpack.c.h.b16 %v174
      %v253 = vunpack.c.l.b16 %v175
      %v254 = vunpack.c.h.b16 %v175
      %v255 = vunpack.c.l.b16 %v176
      %v256 = vunpack.c.h.b16 %v176
      %v257 = vunpack.c.l.b16 %v177
      %v258 = vunpack.c.h.b16 %v177
      %v259 = vunpack.c.l.b16 %v178
      %v260 = vunpack.c.h.b16 %v178
      %v261 = vunpack.c.l.b16 %v179
      %v262 = vunpack.c.h.b16 %v179
      %v263 = vunpack.c.l.b16 %v180
      %v264 = vunpack.c.h.b16 %v180
      %v265 = vunpack.c.l.b16 %v181
      %v266 = vunpack.c.h.b16 %v181
      %v267 = vunpack.c.l.b16 %v182
      %v268 = vunpack.c.h.b16 %v182
      %v269 = vunpack.c.l.b16 %v183
      %v270 = vunpack.c.h.b16 %v183
      %v271 = vunpack.c.l.b16 %v184
      %v272 = vunpack.c.h.b16 %v184
      %v273 = vunpack.c.l.b16 %v185
      %v274 = vunpack.c.h.b16 %v185
      %v275 = vunpack.c.l.b16 %v186
      %v276 = vunpack.c.h.b16 %v186
      %v277 = vunpack.c.l.b16 %v187
      %v278 = vunpack.c.h.b16 %v187
      %v279 = vunpack.c.l.b16 %v188
      %v280 = vunpack.c.h.b16 %v188
      %v281 = vunpack.c.l.b16 %v189
      %v282 = vunpack.c.h.b16 %v189
      %v283 = vunpack.c.l.b16 %v190
      %v284 = vunpack.c.h.b16 %v190
      %v285 = vunpack.c.l.b16 %v191
      %v286 = vunpack.c.h.b16 %v191
      %v287 = vunpack.c.l.b16 %v192
      %v288 = vunpack.c.h.b16 %v192
      %v289 = vunpack.c.l.b16 %v193
      %v290 = vunpack.c.h.b16 %v193
      %v291 = vunpack.c.l.b16 %v194
      %v292 = vunpack.c.h.b16 %v194
      %v293 = vunpack.c.l.b16 %v195
      %v294 = vunpack.c.h.b16 %v195
      %v295 = vunpack.c.l.b16 %v196
      %v296 = vunpack.c.h.b16 %v196
      %v297 = vunpack.c.l.b16 %v197
      %v298 = vunpack.c.h.b16 %v197
      %v299 = vunpack.c.l.b16 %v198
      %v300 = vunpack.c.h.b16 %v198
      %v301 = vunpack.c.l.b16 %v199
      %v302 = vunpack.c.h.b16 %v199
      %v303 = vunpack.c.l.b16 %v200
      %v304 = vunpack.c.h.b16 %v200
      %v305 = vunpack.c.l.b16 %v201
      %v306 = vunpack.c.h.b16 %v201
      %v307 = vunpack.c.l.b16 %v202
      %v308 = vunpack.c.h.b16 %v202
      %v309 = vunpack.c.l.b16 %v203
      %v310 = vunpack.c.h.b16 %v203
      %v311 = vunpack.c.l.b16 %v204
      %v312 = vunpack.c.h.b16 %v204
      %v313 = vpack.c.b16 %v251, %v249
      %v314 = vpack.c.b16 %v252, %v250
      %v315 = vpack.c.b16 %v255, %v253
      %v316 = vpack.c.b16 %v256, %v254
      %v317 = vpack.c.b16 %v259, %v257
      %v318 = vpack.c.b16 %v260, %v258
      %v319 = vpack.c.b16 %v263, %v261
      %v320 = vpack.c.b16 %v264, %v262
      %v321 = vpack.c.b16 %v267, %v265
      %v322 = vpack.c.b16 %v268, %v266
      %v323 = vpack.c.b16 %v271, %v269
      %v324 = vpack.c.b16 %v272, %v270
      %v325 = vpack.c.b16 %v275, %v273
      %v326 = vpack.c.b16 %v276, %v274
      %v327 = vpack.c.b16 %v279, %v277
      %v328 = vpack.c.b16 %v280, %v278
      %v329 = vpack.c.b16 %v283, %v281
      %v330 = vpack.c.b16 %v284, %v282
      %v331 = vpack.c.b16 %v287, %v285
      %v332 = vpack.c.b16 %v288, %v286
      %v333 = vpack.c.b16 %v291, %v289
      %v334 = vpack.c.b16 %v292, %v290
      %v335 = vpack.c.b16 %v295, %v293
      %v336 = vpack.c.b16 %v296, %v294
      %v337 = vpack.c.b16 %v299, %v297
      %v338 = vpack.c.b16 %v300, %v298
      %v339 = vpack.c.b16 %v303, %v301
      %v340 = vpack.c.b16 %v304, %v302
      %v341 = vpack.c.b16 %v307, %v305
      %v342 = vpack.c.b16 %v308, %v306
      %v343 = vpack.c.b16 %v311, %v309
      %v344 = vpack.c.b16 %v312, %v310
      %377 = vmatprep.subr.bf16.mxu0 %v328
      %378 = vmatpush1.bf16.msra.mxu0 %v327
      %379 = vmatprep.subr.bf16.mxu0 %v326
      %380 = vmatpush1.bf16.msra.mxu0 %v325
      %381 = vmatprep.subr.bf16.mxu0 %v324
      %382 = vmatpush1.bf16.msra.mxu0 %v323
      %383 = vmatprep.subr.bf16.mxu0 %v322
      %384 = vmatpush1.bf16.msra.mxu0 %v321
      %385 = vmatprep.subr.bf16.mxu0 %v320
      %386 = vmatpush1.bf16.msra.mxu0 %v319
      %387 = vmatprep.subr.bf16.mxu0 %v318
      %388 = vmatpush1.bf16.msra.mxu0 %v317
      %389 = vmatprep.subr.bf16.mxu0 %v316
      %390 = vmatpush1.bf16.msra.mxu0 %v315
      %391 = vmatprep.subr.bf16.mxu0 %v314
      %392 = vmatpush1.bf16.msra.mxu0 %v313
      %393 = vmatprep.subr.bf16.mxu0 %v344
      %394 = vmatpush2.bf16.msra.mxu0 %v343
      %395 = vmatprep.subr.bf16.mxu0 %v342
      %396 = vmatpush2.bf16.msra.mxu0 %v341
      %397 = vmatprep.subr.bf16.mxu0 %v340
      %398 = vmatpush2.bf16.msra.mxu0 %v339
      %399 = vmatprep.subr.bf16.mxu0 %v338
      %400 = vmatpush2.bf16.msra.mxu0 %v337
      %401 = vmatprep.subr.bf16.mxu0 %v336
      %402 = vmatpush2.bf16.msra.mxu0 %v335
      %403 = vmatprep.subr.bf16.mxu0 %v334
      %404 = vmatpush2.bf16.msra.mxu0 %v333
      %405 = vmatprep.subr.bf16.mxu0 %v332
      %406 = vmatpush2.bf16.msra.mxu0 %v331
      %407 = vmatprep.subr.bf16.mxu0 %v330
      %408 = vmatpush2.bf16.msra.mxu0 %v329
      %409 = vmatprep.mubr.bf16.mxu0 %v172
      %410 = vmatmul.mubr.bf16.gmra.mxu0 %v171
      %v411 = vpop.f32.mrf.mxu0
      %v412 = vadd.f32 %v210, %v411
      %v413 = vpop.f32.mrf.mxu0
      %v414 = vadd.f32 %v214, %v413
      %v415 = vpop.f32.mrf.mxu0
      %v416 = vpop.f32.mrf.mxu0
      %417 = vdwg.mxu0
      %v418 = vmax.f32 %v412, 0.0
      %v419 = vmax.f32 %v414, 0.0
      %v420 = vpack.c.bf16 %v418, %v418
      %v421 = vpack.c.bf16 %v419, %v419
      %v422 = vld [vmem:[#allocation9] sm:$0xff]
      %v423 = vld [vmem:[#allocation9 + $0x8] sm:$0xff]
      %v424 = vld [vmem:[#allocation9 + $0x10] sm:$0xff]
      %v425 = vld [vmem:[#allocation9 + $0x18] sm:$0xff]
      %v426 = vld [vmem:[#allocation9 + $0x20] sm:$0xff]
      %v427 = vld [vmem:[#allocation9 + $0x28] sm:$0xff]
      %v428 = vld [vmem:[#allocation9 + $0x30] sm:$0xff]
      %v429 = vld [vmem:[#allocation9 + $0x38] sm:$0xff]
      %v430 = vld [vmem:[#allocation9 + $0x40] sm:$0xff]
      %v431 = vld [vmem:[#allocation9 + $0x48] sm:$0xff]
      %v432 = vld [vmem:[#allocation9 + $0x50] sm:$0xff]
      %v433 = vld [vmem:[#allocation9 + $0x58] sm:$0xff]
      %v434 = vld [vmem:[#allocation9 + $0x60] sm:$0xff]
      %v435 = vld [vmem:[#allocation9 + $0x68] sm:$0xff]
      %v436 = vld [vmem:[#allocation9 + $0x70] sm:$0xff]
      %v437 = vld [vmem:[#allocation9 + $0x78] sm:$0xff]
      %v438 = vld [vmem:[#allocation9 + $0x80] sm:$0xff]
      %v439 = vld [vmem:[#allocation9 + $0x88] sm:$0xff]
      %v440 = vld [vmem:[#allocation9 + $0x90] sm:$0xff]
      %v441 = vld [vmem:[#allocation9 + $0x98] sm:$0xff]
      %v442 = vld [vmem:[#allocation9 + $0xa0] sm:$0xff]
      %v443 = vld [vmem:[#allocation9 + $0xa8] sm:$0xff]
      %v444 = vld [vmem:[#allocation9 + $0xb0] sm:$0xff]
      %v445 = vld [vmem:[#allocation9 + $0xb8] sm:$0xff]
      %v446 = vld [vmem:[#allocation9 + $0xc0] sm:$0xff]
      %v447 = vld [vmem:[#allocation9 + $0xc8] sm:$0xff]
      %v448 = vld [vmem:[#allocation9 + $0xd0] sm:$0xff]
      %v449 = vld [vmem:[#allocation9 + $0xd8] sm:$0xff]
      %v450 = vld [vmem:[#allocation9 + $0xe0] sm:$0xff]
      %v451 = vld [vmem:[#allocation9 + $0xe8] sm:$0xff]
      %v452 = vld [vmem:[#allocation9 + $0xf0] sm:$0xff]
      %v453 = vld [vmem:[#allocation9 + $0xf8] sm:$0xff]
      %v454 = vld [vmem:[%s6] sm:$0x3]
      %v456 = vlaneseq
      %v457 = vshrl.u32 %v456, 7
      %v458 = vsub.s32 0, %v457
      %v459 = vrot.slane %v454, %v458
      %v460 = vlaneseq
      %v461 = vshrl.u32 %v460, 7
      %v462 = vsub.s32 1, %v461
      %v463 = vrot.slane %v454, %v462
      %v498 = vunpack.c.l.b16 %v422
      %v499 = vunpack.c.h.b16 %v422
      %v500 = vunpack.c.l.b16 %v423
      %v501 = vunpack.c.h.b16 %v423
      %v502 = vunpack.c.l.b16 %v424
      %v503 = vunpack.c.h.b16 %v424
      %v504 = vunpack.c.l.b16 %v425
      %v505 = vunpack.c.h.b16 %v425
      %v506 = vunpack.c.l.b16 %v426
      %v507 = vunpack.c.h.b16 %v426
      %v508 = vunpack.c.l.b16 %v427
      %v509 = vunpack.c.h.b16 %v427
      %v510 = vunpack.c.l.b16 %v428
      %v511 = vunpack.c.h.b16 %v428
      %v512 = vunpack.c.l.b16 %v429
      %v513 = vunpack.c.h.b16 %v429
      %v514 = vunpack.c.l.b16 %v430
      %v515 = vunpack.c.h.b16 %v430
      %v516 = vunpack.c.l.b16 %v431
      %v517 = vunpack.c.h.b16 %v431
      %v518 = vunpack.c.l.b16 %v432
      %v519 = vunpack.c.h.b16 %v432
      %v520 = vunpack.c.l.b16 %v433
      %v521 = vunpack.c.h.b16 %v433
      %v522 = vunpack.c.l.b16 %v434
      %v523 = vunpack.c.h.b16 %v434
      %v524 = vunpack.c.l.b16 %v435
      %v525 = vunpack.c.h.b16 %v435
      %v526 = vunpack.c.l.b16 %v436
      %v527 = vunpack.c.h.b16 %v436
      %v528 = vunpack.c.l.b16 %v437
      %v529 = vunpack.c.h.b16 %v437
      %v530 = vunpack.c.l.b16 %v438
      %v531 = vunpack.c.h.b16 %v438
      %v532 = vunpack.c.l.b16 %v439
      %v533 = vunpack.c.h.b16 %v439
      %v534 = vunpack.c.l.b16 %v440
      %v535 = vunpack.c.h.b16 %v440
      %v536 = vunpack.c.l.b16 %v441
      %v537 = vunpack.c.h.b16 %v441
      %v538 = vunpack.c.l.b16 %v442
      %v539 = vunpack.c.h.b16 %v442
      %v540 = vunpack.c.l.b16 %v443
      %v541 = vunpack.c.h.b16 %v443
      %v542 = vunpack.c.l.b16 %v444
      %v543 = vunpack.c.h.b16 %v444
      %v544 = vunpack.c.l.b16 %v445
      %v545 = vunpack.c.h.b16 %v445
      %v546 = vunpack.c.l.b16 %v446
      %v547 = vunpack.c.h.b16 %v446
      %v548 = vunpack.c.l.b16 %v447
      %v549 = vunpack.c.h.b16 %v447
      %v550 = vunpack.c.l.b16 %v448
      %v551 = vunpack.c.h.b16 %v448
      %v552 = vunpack.c.l.b16 %v449
      %v553 = vunpack.c.h.b16 %v449
      %v554 = vunpack.c.l.b16 %v450
      %v555 = vunpack.c.h.b16 %v450
      %v556 = vunpack.c.l.b16 %v451
      %v557 = vunpack.c.h.b16 %v451
      %v558 = vunpack.c.l.b16 %v452
      %v559 = vunpack.c.h.b16 %v452
      %v560 = vunpack.c.l.b16 %v453
      %v561 = vunpack.c.h.b16 %v453
      %v562 = vpack.c.b16 %v500, %v498
      %v563 = vpack.c.b16 %v501, %v499
      %v564 = vpack.c.b16 %v504, %v502
      %v565 = vpack.c.b16 %v505, %v503
      %v566 = vpack.c.b16 %v508, %v506
      %v567 = vpack.c.b16 %v509, %v507
      %v568 = vpack.c.b16 %v512, %v510
      %v569 = vpack.c.b16 %v513, %v511
      %v570 = vpack.c.b16 %v516, %v514
      %v571 = vpack.c.b16 %v517, %v515
      %v572 = vpack.c.b16 %v520, %v518
      %v573 = vpack.c.b16 %v521, %v519
      %v574 = vpack.c.b16 %v524, %v522
      %v575 = vpack.c.b16 %v525, %v523
      %v576 = vpack.c.b16 %v528, %v526
      %v577 = vpack.c.b16 %v529, %v527
      %v578 = vpack.c.b16 %v532, %v530
      %v579 = vpack.c.b16 %v533, %v531
      %v580 = vpack.c.b16 %v536, %v534
      %v581 = vpack.c.b16 %v537, %v535
      %v582 = vpack.c.b16 %v540, %v538
      %v583 = vpack.c.b16 %v541, %v539
      %v584 = vpack.c.b16 %v544, %v542
      %v585 = vpack.c.b16 %v545, %v543
      %v586 = vpack.c.b16 %v548, %v546
      %v587 = vpack.c.b16 %v549, %v547
      %v588 = vpack.c.b16 %v552, %v550
      %v589 = vpack.c.b16 %v553, %v551
      %v590 = vpack.c.b16 %v556, %v554
      %v591 = vpack.c.b16 %v557, %v555
      %v592 = vpack.c.b16 %v560, %v558
      %v593 = vpack.c.b16 %v561, %v559
      %626 = vmatprep.subr.bf16.mxu0 %v577
      %627 = vmatpush1.bf16.msra.mxu0 %v576
      %628 = vmatprep.subr.bf16.mxu0 %v575
      %629 = vmatpush1.bf16.msra.mxu0 %v574
      %630 = vmatprep.subr.bf16.mxu0 %v573
      %631 = vmatpush1.bf16.msra.mxu0 %v572
      %632 = vmatprep.subr.bf16.mxu0 %v571
      %633 = vmatpush1.bf16.msra.mxu0 %v570
      %634 = vmatprep.subr.bf16.mxu0 %v569
      %635 = vmatpush1.bf16.msra.mxu0 %v568
      %636 = vmatprep.subr.bf16.mxu0 %v567
      %637 = vmatpush1.bf16.msra.mxu0 %v566
      %638 = vmatprep.subr.bf16.mxu0 %v565
      %639 = vmatpush1.bf16.msra.mxu0 %v564
      %640 = vmatprep.subr.bf16.mxu0 %v563
      %641 = vmatpush1.bf16.msra.mxu0 %v562
      %642 = vmatprep.subr.bf16.mxu0 %v593
      %643 = vmatpush2.bf16.msra.mxu0 %v592
      %644 = vmatprep.subr.bf16.mxu0 %v591
      %645 = vmatpush2.bf16.msra.mxu0 %v590
      %646 = vmatprep.subr.bf16.mxu0 %v589
      %647 = vmatpush2.bf16.msra.mxu0 %v588
      %648 = vmatprep.subr.bf16.mxu0 %v587
      %649 = vmatpush2.bf16.msra.mxu0 %v586
      %650 = vmatprep.subr.bf16.mxu0 %v585
      %651 = vmatpush2.bf16.msra.mxu0 %v584
      %652 = vmatprep.subr.bf16.mxu0 %v583
      %653 = vmatpush2.bf16.msra.mxu0 %v582
      %654 = vmatprep.subr.bf16.mxu0 %v581
      %655 = vmatpush2.bf16.msra.mxu0 %v580
      %656 = vmatprep.subr.bf16.mxu0 %v579
      %657 = vmatpush2.bf16.msra.mxu0 %v578
      %658 = vmatprep.mubr.bf16.mxu0 %v421
      %659 = vmatmul.mubr.bf16.gmra.mxu0 %v420
      %v660 = vpop.f32.mrf.mxu0
      %v661 = vadd.f32 %v459, %v660
      %v662 = vpop.f32.mrf.mxu0
      %v663 = vadd.f32 %v463, %v662
      %v664 = vpop.f32.mrf.mxu0
      %v665 = vpop.f32.mrf.mxu0
      %666 = vdwg.mxu0
      %667 = vst [vmem:[#allocation11] sm:$0xff] %v661
      %668 = vst [vmem:[#allocation11 + $0x8] sm:$0xff] %v663
    $region53: #{tpu_custom_call.1} parent=1 // pred_fallthru
      _
    // Predicated region
    $region54: #{tpu_custom_call.1} parent=1 // pred_check
      _
    $region55: #{tpu_custom_call.1} parent=1 // pred_check_branch
      %670 = sbr.rel (0) target = $region57
    $region56: #{tpu_custom_call.1} parent=1 // pred_region
      %s672 = ssub.s32 256, 256
      %673 = vsyncadd [#allocation5], %s672
      %s675 = sshll.u32 [#allocation11], 4
      %s676 = int_to_ptr.vmem [resolvable:$true] %s675
      %678 = dma.vmem_to_hbm [thread:$0]  %s676, 256, %s7, [#allocation5]
    $region57: #{tpu_custom_call.1} parent=1 // pred_fallthru
      _
    // Predicated region
    $region58: #{tpu_custom_call.1} parent=1 // pred_check
      _
    $region59: #{tpu_custom_call.1} parent=1 // pred_check_branch
      %680 = sbr.rel (0) target = $region61
    $region60: #{tpu_custom_call.1} parent=1 // pred_region
      %681 = dma.done [#allocation5], 256
    $region61: #{tpu_custom_call.1} parent=1 // pred_fallthru
      _
    %682 = vsyncpa [#allocation4], 1
    %683 = vsyncpa [#allocation7], 1
    %684 = vsyncpa [#allocation10], 1
    %685 = vsyncpa [#allocation5], 1

</llo_original>
